<compile_context>
chip_gen: v7x
topology: tpu7x:2x2x1
jax: 0.10.0
libtpu: 0.0.40
codegen_flags: <defaults>
</compile_context>

<pallas_src>
import math

import jax
import jax.numpy as jnp
from jax import lax
from jax.experimental import pallas as pl
from jax.experimental.pallas import tpu as pltpu
import numpy as np

# Exact f32 matmuls everywhere (reference and kernel) so the Pallas output can
# be compared against the pure-JAX reference at tight tolerance.
jax.config.update("jax_default_matmul_precision", "highest")


def _causal_attn_v2_kernel(xq_ref, k_ref, wq_ref, wv_ref, attn_ref, v_ref):
    # xq_ref:   (Bb, tq, d_in)   query-tile rows of x (q and v projections)
    # k_ref:    (Bb, T,  d_out)  precomputed k = x @ Wk (grid-constant over qt)
    # wq_ref:   (d_in, d_out)
    # wv_ref:   (d_in, d_out)
    # attn_ref: (Bb, tq, T)      masked_norm_attn_weights tile
    # v_ref:    (Bb, tq, d_out)  v tile
    Bb, tq, d_in = xq_ref.shape
    T = k_ref.shape[1]
    d_out = wq_ref.shape[1]
    scale = 1.0 / math.sqrt(float(d_out))

    xq = xq_ref[...].reshape(Bb * tq, d_in)

    # q / v projections of this query tile.  2D matmuls keep the MXU
    # lane-dense; the 1/sqrt(d_out) of softmax #1 is folded into q
    # (tq*d_out multiplies instead of tq*T).
    q = jnp.dot(xq, wq_ref[...], preferred_element_type=jnp.float32) * scale
    v = jnp.dot(xq, wv_ref[...], preferred_element_type=jnp.float32)
    q = q.reshape(Bb, tq, d_out)

    # scores = q @ k^T as a batched contraction over d_out (no k transpose).
    scores = jnp.einsum("bqd,bkd->bqk", q, k_ref[...],
                        preferred_element_type=jnp.float32)     # (Bb, tq, T)

    # softmax #1 (SelfAttentionV2); scale already folded into q.
    # Exact reciprocal: this value feeds the returned attention weights.
    m1 = jnp.max(scores, axis=-1, keepdims=True)
    e1 = jnp.exp(scores - m1)
    a1 = e1 / jnp.sum(e1, axis=-1, keepdims=True)

    # Strict-upper-triangular causal mask for this query tile: single (tq, T)
    # iota + broadcast compare against the (tq, 1) absolute row index.
    q0 = pl.program_id(1) * tq
    row = q0 + lax.broadcasted_iota(jnp.int32, (tq, 1), 0)
    col = lax.broadcasted_iota(jnp.int32, (tq, T), 1)
    mask = col > row                                            # (tq, T)

    # softmax #2 (CausalAttentionV2).  a1*scale lies in [0, scale] <= 1, so the
    # row-max subtraction is unnecessary; masked lanes are zeroed after exp so
    # they drop out of the row-sum — identical to masked_fill(-inf) -> softmax.
    e2 = jnp.where(mask[None, :, :], 0.0, jnp.exp(a1 * scale))
    a2 = e2 / jnp.sum(e2, axis=-1, keepdims=True)

    attn_ref[...] = a2.astype(attn_ref.dtype)
    v_ref[...] = v.reshape(Bb, tq, d_out).astype(v_ref.dtype)


def causal_attention_v2(x, wq, wk, wv, *, block_q=None, block_b=None):
    """CausalAttentionV2.forward.

    x: (B, T, d_in); wq/wk/wv: (d_in, d_out) (pre-transposed nn.Linear weights,
    bias=False). Returns (masked_norm_attn_weights (B, T, T), v (B, T, d_out)).
    """
    B, T, d_in = x.shape
    d_out = wq.shape[1]
    esz = jnp.dtype(x.dtype).itemsize
    # Minimum sublane multiple for the input dtype (f32:8, bf16:16, i8/fp8:32).
    sub = {4: 8, 2: 16, 1: 32}.get(esz, 8)

    # Generation-aware VMEM capacity (v5e/v6e: 128 MiB, v7x: 64 MiB per TC).
    try:
        vmem_cap = int(pltpu.get_tpu_info().vmem_capacity_bytes)
    except Exception:
        vmem_cap = 64 * 2**20          # conservative (v7x-sized) fallback

    def vmem_need(bb, bq):
        # Double-buffered pipeline tiles + generous live f32/int32 temporaries
        # (scores, e1/a1, e2/a2, q/v, mask) so the tile choice itself is
        # VMEM-aware, not just the limit.
        io = esz * (2 * bb * bq * d_in         # x query tile
                    + 2 * bb * T * d_out       # precomputed k (grid-constant)
                    + 2 * 2 * d_in * d_out     # wq, wv
                    + 2 * bb * bq * T          # attn output tile
                    + 2 * bb * bq * d_out)     # v output tile
        live = 4 * bb * bq * (4 * T + 3 * d_out) + 4 * bq * T
        return io + live

    budget = (3 * vmem_cap) // 4

    # Query-dim tiling bounds the live (block_q, T) softmax slabs.  Bigger
    # tiles on 128 MiB parts (kernel is HBM-write-bound on the (T, T) attn
    # output; bigger tiles amortize per-step overhead), smaller on v7x.
    if block_q is None:
        if T <= 256:
            block_q = T
        else:
            cands = [c for c in (1024, 512, 256, 128, 64, 32, 16, 8)
                     if c < T and T % c == 0 and c % sub == 0]
            block_q = next((c for c in cands if vmem_need(1, c) <= budget),
                           cands[-1] if cands else T)
    assert block_q == T or (T % block_q == 0 and block_q % sub == 0), (
        f"block_q must equal T, or divide T and be a multiple of {sub} "
        f"for dtype {x.dtype}")

    # For tiny T, fold several batch elements into one grid step so the MXU
    # sees block_b*block_q sublanes and per-step overhead is paid once.
    if block_b is None:
        block_b = B if (block_q == T and T % sub == 0 and B * T <= 1024) else 1
    assert B % block_b == 0
    assert block_b == 1 or block_q % sub == 0

    grid = (B // block_b, T // block_q)

    # Hoisted key projection (perf-review item 1, option (a)): computed ONCE
    # here instead of once per query tile inside the kernel; the kernel streams
    # it as a grid-constant (block_b, T, d_out) operand (index map constant in
    # qt, so the pipeline does not re-DMA it between query tiles).
    k = jnp.einsum("btd,de->bte", x, wk)

    # Explicit VMEM budget with generation-aware headroom (<= cap - 12 MiB).
    vmem_limit = int(min(vmem_cap - 12 * 2**20,
                         max(32 * 2**20, 2 * vmem_need(block_b, block_q))))

    cost = pl.CostEstimate(
        flops=int(2 * B * T * d_in * 2 * d_out + 2 * B * T * T * d_out),
        transcendentals=int(2 * B * T * T),
        bytes_accessed=int(esz * (B * T * d_in + B * T * d_out
                                  + 2 * d_in * d_out
                                  + B * T * T + B * T * d_out)),
    )

    grid_spec = pltpu.PrefetchScalarGridSpec(
        num_scalar_prefetch=0,
        grid=grid,
        in_specs=[
            # query-tile rows of x
            pl.BlockSpec((block_b, block_q, d_in), lambda b, qt: (b, qt, 0)),
            # precomputed k, constant along qt
            pl.BlockSpec((block_b, T, d_out), lambda b, qt: (b, 0, 0)),
            # weights, constant across the whole grid
            pl.BlockSpec((d_in, d_out), lambda b, qt: (0, 0)),
            pl.BlockSpec((d_in, d_out), lambda b, qt: (0, 0)),
        ],
        out_specs=[
            pl.BlockSpec((block_b, block_q, T), lambda b, qt: (b, qt, 0)),
            pl.BlockSpec((block_b, block_q, d_out), lambda b, qt: (b, qt, 0)),
        ],
    )

    attn, v = pl.pallas_call(
        _causal_attn_v2_kernel,
        out_shape=(
            jax.ShapeDtypeStruct((B, T, T), x.dtype),
            jax.ShapeDtypeStruct((B, T, d_out), x.dtype),
        ),
        grid_spec=grid_spec,
        compiler_params=pltpu.CompilerParams(
            # No cross-step carry (k is precomputed), so both axes stay fully
            # independent -> shardable across v7x's 2 TensorCores.
            dimension_semantics=("parallel", "parallel"),
            vmem_limit_bytes=vmem_limit,
        ),
        cost_estimate=cost,
    )(x, k, wq, wv)
    return attn, v


def _reference(x, wq, wk, wv):
    """Pure-JAX reproduction of CausalAttentionV2.forward, for verification."""
    d_out = wq.shape[1]
    scale = 1.0 / math.sqrt(float(d_out))
    q = x @ wq
    k = x @ wk
    v = x @ wv
    scores = jnp.einsum("btd,bsd->bts", q, k)
    T = scores.shape[1]
    mask = jnp.triu(jnp.ones((T, T), dtype=bool), k=1)
    a1 = jax.nn.softmax(scores * scale, axis=-1)
    a2 = jax.nn.softmax(jnp.where(mask, -jnp.inf, a1) * scale, axis=-1)
    return a2, v


if __name__ == "__main__":
    key = jax.random.PRNGKey(0)
    B, T, d_in, d_out = 2, 8, 32, 16   # small shapes; context_length == T

    kx, kq, kk, kv = jax.random.split(key, 4)
    x = jax.random.normal(kx, (B, T, d_in), dtype=jnp.float32)
    # nn.Linear weight shape is (d_out, d_in); we store the transpose.
    bound = 1.0 / math.sqrt(d_in)
    wq = jax.random.uniform(kq, (d_in, d_out), jnp.float32, -bound, bound)
    wk = jax.random.uniform(kk, (d_in, d_out), jnp.float32, -bound, bound)
    wv = jax.random.uniform(kv, (d_in, d_out), jnp.float32, -bound, bound)

    attn, v = causal_attention_v2(x, wq, wk, wv)
    attn = jax.block_until_ready(attn)
    v = jax.block_until_ready(v)

    ref_attn, ref_v = _reference(x, wq, wk, wv)
    # Exact reciprocals / exact f32 matmuls everywhere -> tight tolerances.
    np.testing.assert_allclose(np.asarray(v), np.asarray(ref_v),
                               rtol=1e-5, atol=1e-5)
    np.testing.assert_allclose(np.asarray(attn), np.asarray(ref_attn),
                               rtol=1e-4, atol=1e-5)
    print("KERNEL_OK")
</pallas_src>

<mosaic_0001>
module attributes {stable_mosaic.version = 11 : i64} {
  func.func @_causal_attn_v2_kernel(%arg0: i32, %arg1: i32, %arg2: memref<2x8x32xf32, #tpu.memory_space<vmem>>, %arg3: memref<2x8x16xf32, #tpu.memory_space<vmem>>, %arg4: memref<32x16xf32, #tpu.memory_space<vmem>>, %arg5: memref<32x16xf32, #tpu.memory_space<vmem>>, %arg6: memref<2x8x8xf32, #tpu.memory_space<vmem>>, %arg7: memref<2x8x16xf32, #tpu.memory_space<vmem>>) attributes {dimension_semantics = [#tpu.dimension_semantics<parallel>, #tpu.dimension_semantics<parallel>], iteration_bounds = array<i64: 1, 1>, scalar_prefetch = 0 : i64, scratch_operands = 0 : i64, tpu.core_type = #tpu.core_type<tc>, window_params = [{transform_indices = @transform_0, window_bounds = array<i64: 2, 8, 32>}, {transform_indices = @transform_1, window_bounds = array<i64: 2, 8, 16>}, {pipeline_mode = #tpu.pipeline_mode<synchronous>, transform_indices = @transform_2, window_bounds = array<i64: 32, 16>}, {pipeline_mode = #tpu.pipeline_mode<synchronous>, transform_indices = @transform_3, window_bounds = array<i64: 32, 16>}, {transform_indices = @transform_4, window_bounds = array<i64: 2, 8, 8>}, {transform_indices = @transform_5, window_bounds = array<i64: 2, 8, 16>}]} {
    %c0 = arith.constant 0 : index
    %c0_0 = arith.constant 0 : index
    %c0_1 = arith.constant 0 : index
    %0 = vector.load %arg2[%c0, %c0_0, %c0_1] : memref<2x8x32xf32, #tpu.memory_space<vmem>>, vector<2x8x32xf32>
    %1 = vector.shape_cast %0 : vector<2x8x32xf32> to vector<16x32xf32>
    %c0_2 = arith.constant 0 : index
    %c0_3 = arith.constant 0 : index
    %2 = vector.load %arg4[%c0_2, %c0_3] : memref<32x16xf32, #tpu.memory_space<vmem>>, vector<32x16xf32>
    %cst = arith.constant dense<0.000000e+00> : vector<16x16xf32>
    %3 = tpu.matmul %1, %2, %cst {dimension_numbers = #tpu.dot_dimension_numbers<[1], [0], [0], [1], [0, 0, 1, 1], [], []>, precision = #tpu.contract_precision<fp32>} : vector<16x32xf32>, vector<32x16xf32>, vector<16x16xf32> -> vector<16x16xf32>
    %cst_4 = arith.constant 2.500000e-01 : f32
    %4 = vector.broadcast %cst_4 : f32 to vector<16x16xf32>
    %5 = arith.mulf %3, %4 : vector<16x16xf32>
    %c0_5 = arith.constant 0 : index
    %c0_6 = arith.constant 0 : index
    %6 = vector.load %arg5[%c0_5, %c0_6] : memref<32x16xf32, #tpu.memory_space<vmem>>, vector<32x16xf32>
    %cst_7 = arith.constant dense<0.000000e+00> : vector<16x16xf32>
    %7 = tpu.matmul %1, %6, %cst_7 {dimension_numbers = #tpu.dot_dimension_numbers<[1], [0], [0], [1], [0, 0, 1, 1], [], []>, precision = #tpu.contract_precision<fp32>} : vector<16x32xf32>, vector<32x16xf32>, vector<16x16xf32> -> vector<16x16xf32>
    %8 = vector.shape_cast %5 : vector<16x16xf32> to vector<2x8x16xf32>
    %c0_8 = arith.constant 0 : index
    %c0_9 = arith.constant 0 : index
    %c0_10 = arith.constant 0 : index
    %9 = vector.load %arg3[%c0_8, %c0_9, %c0_10] : memref<2x8x16xf32, #tpu.memory_space<vmem>>, vector<2x8x16xf32>
    "tpu.trace_start"() <{level = 10 : i32, message = "bqd,bkd->bqk"}> : () -> ()
    %cst_11 = arith.constant dense<0.000000e+00> : vector<2x8x8xf32>
    %10 = tpu.matmul %8, %9, %cst_11 {dimension_numbers = #tpu.dot_dimension_numbers<[2], [2], [1], [1], [0, 0, 0, 1, 1, 1], [0], [0]>, precision = #tpu.contract_precision<fp32>} : vector<2x8x16xf32>, vector<2x8x16xf32>, vector<2x8x8xf32> -> vector<2x8x8xf32>
    "tpu.trace_stop"() : () -> ()
    %cst_12 = arith.constant dense<0xFF800000> : vector<2x8xf32>
    %11 = vector.multi_reduction <maximumf>, %10, %cst_12 [2] : vector<2x8x8xf32> to vector<2x8xf32>
    %12 = vector.shape_cast %11 : vector<2x8xf32> to vector<2x8x1xf32>
    %13 = vector.broadcast %12 : vector<2x8x1xf32> to vector<2x8x8xf32>
    %14 = arith.subf %10, %13 : vector<2x8x8xf32>
    %15 = math.exp %14 : vector<2x8x8xf32>
    %cst_13 = arith.constant dense<0.000000e+00> : vector<2x8xf32>
    %16 = vector.multi_reduction <add>, %15, %cst_13 [2] : vector<2x8x8xf32> to vector<2x8xf32>
    %17 = vector.shape_cast %16 : vector<2x8xf32> to vector<2x8x1xf32>
    %18 = vector.broadcast %17 : vector<2x8x1xf32> to vector<2x8x8xf32>
    %19 = arith.divf %15, %18 : vector<2x8x8xf32>
    %c8_i32 = arith.constant 8 : i32
    %20 = arith.muli %arg1, %c8_i32 : i32
    %21 = tpu.iota {dimensions = array<i32: 0>} : vector<8x1xi32>
    %22 = vector.broadcast %20 : i32 to vector<8x1xi32>
    %23 = arith.addi %22, %21 : vector<8x1xi32>
    %24 = tpu.iota {dimensions = array<i32: 1>} : vector<8x8xi32>
    %25 = vector.broadcast %23 : vector<8x1xi32> to vector<8x8xi32>
    %26 = arith.cmpi sgt, %24, %25 : vector<8x8xi32>
    %27 = vector.shape_cast %26 : vector<8x8xi1> to vector<1x8x8xi1>
    %cst_14 = arith.constant 2.500000e-01 : f32
    %28 = vector.broadcast %cst_14 : f32 to vector<2x8x8xf32>
    %29 = arith.mulf %19, %28 : vector<2x8x8xf32>
    %30 = math.exp %29 : vector<2x8x8xf32>
    %cst_15 = arith.constant 0.000000e+00 : f32
    %31 = vector.shape_cast %27 : vector<1x8x8xi1> to vector<1x8x8xi1>
    %32 = vector.broadcast %31 : vector<1x8x8xi1> to vector<2x8x8xi1>
    %33 = vector.broadcast %cst_15 : f32 to vector<2x8x8xf32>
    %34 = arith.select %32, %33, %30 : vector<2x8x8xi1>, vector<2x8x8xf32>
    %cst_16 = arith.constant dense<0.000000e+00> : vector<2x8xf32>
    %35 = vector.multi_reduction <add>, %34, %cst_16 [2] : vector<2x8x8xf32> to vector<2x8xf32>
    %36 = vector.shape_cast %35 : vector<2x8xf32> to vector<2x8x1xf32>
    %37 = vector.broadcast %36 : vector<2x8x1xf32> to vector<2x8x8xf32>
    %38 = arith.divf %34, %37 : vector<2x8x8xf32>
    %c0_17 = arith.constant 0 : index
    %c0_18 = arith.constant 0 : index
    %c0_19 = arith.constant 0 : index
    %39 = vector.load %arg6[%c0_17, %c0_18, %c0_19] : memref<2x8x8xf32, #tpu.memory_space<vmem>>, vector<2x8x8xf32>
    tpu.vector_store %arg6[%c0_17, %c0_18, %c0_19], %38 {strides = array<i32>} : memref<2x8x8xf32, #tpu.memory_space<vmem>>, vector<2x8x8xf32>,
    %40 = vector.shape_cast %7 : vector<16x16xf32> to vector<2x8x16xf32>
    %c0_20 = arith.constant 0 : index
    %c0_21 = arith.constant 0 : index
    %c0_22 = arith.constant 0 : index
    %41 = vector.load %arg7[%c0_20, %c0_21, %c0_22] : memref<2x8x16xf32, #tpu.memory_space<vmem>>, vector<2x8x16xf32>
    tpu.vector_store %arg7[%c0_20, %c0_21, %c0_22], %40 {strides = array<i32>} : memref<2x8x16xf32, #tpu.memory_space<vmem>>, vector<2x8x16xf32>,
    return
  }
  func.func @transform_0(%arg0: i32, %arg1: i32) -> (i32, i32, i32) {
    %c0_i32 = arith.constant 0 : i32
    %c0_i32_0 = arith.constant 0 : i32
    return %arg0, %arg1, %c0_i32 : i32, i32, i32
  }
  func.func @transform_1(%arg0: i32, %arg1: i32) -> (i32, i32, i32) {
    %c0_i32 = arith.constant 0 : i32
    %c0_i32_0 = arith.constant 0 : i32
    %c0_i32_1 = arith.constant 0 : i32
    return %arg0, %c0_i32, %c0_i32_0 : i32, i32, i32
  }
  func.func @transform_2(%arg0: i32, %arg1: i32) -> (i32, i32) {
    %c0_i32 = arith.constant 0 : i32
    %c0_i32_0 = arith.constant 0 : i32
    %c0_i32_1 = arith.constant 0 : i32
    return %c0_i32, %c0_i32_0 : i32, i32
  }
  func.func @transform_3(%arg0: i32, %arg1: i32) -> (i32, i32) {
    %c0_i32 = arith.constant 0 : i32
    %c0_i32_0 = arith.constant 0 : i32
    %c0_i32_1 = arith.constant 0 : i32
    return %c0_i32, %c0_i32_0 : i32, i32
  }
  func.func @transform_4(%arg0: i32, %arg1: i32) -> (i32, i32, i32) {
    %c0_i32 = arith.constant 0 : i32
    %c0_i32_0 = arith.constant 0 : i32
    return %arg0, %arg1, %c0_i32 : i32, i32, i32
  }
  func.func @transform_5(%arg0: i32, %arg1: i32) -> (i32, i32, i32) {
    %c0_i32 = arith.constant 0 : i32
    %c0_i32_0 = arith.constant 0 : i32
    return %arg0, %arg1, %c0_i32 : i32, i32, i32
  }
}

</mosaic_0001>

<llo_original>
// kernel: tpu_custom_call.1
$region0: #{tpu_custom_call.1}
  #allocation0 [shape = 'u32[]', space=smem, size = 0x4, offset = 0x4, fixed_abs, tag = 'smem constant byte address 0x4 - core index']
  #allocation1 [shape = 'u32[144,128]{1,0:T(1,128)}', space=vmem, size = 0x12000, scoped, tag = 'internal scratch']
  %s0 = inlined_call_operand.vmem [shape: f32[2,8,32], index: 0, kind: input, shape index: {}]
  %s1 = inlined_call_operand.vmem [shape: f32[2,8,16], index: 1, kind: input, shape index: {}]
  %s2 = inlined_call_operand.vmem [shape: f32[32,16], index: 2, kind: input, shape index: {}]
  %s3 = inlined_call_operand.vmem [shape: f32[32,16], index: 3, kind: input, shape index: {}]
  %s4 = inlined_call_operand.hbm [shape: f32[2,8,8], index: 4, kind: output, shape index: {0}]
  %s5 = inlined_call_operand.hbm [shape: f32[2,8,16], index: 5, kind: output, shape index: {1}]
  %6 = xla_tuple %s4, %s5
  %s7 = sld [smem:[#allocation0]]
  $region34: #{tpu_custom_call.1} parent=0
    _
  %s9 = ssub.s32 1, %s7
  %s10 = scalar_select 0, %s9, %s7
  $region1: #{tpu_custom_call.1} parent=0
    #allocation2 [shape = 'u8[8192]{0}', space=vmem, size = 0x2000, scoped, tag = 'output window, operand 0, single buffered']
    #allocation3 [shape = 's32[1]{0}', space=sflag, size = 0x4, scoped, tag = 'scoped memory for tpu_custom_call.1']
    #allocation4 [shape = 'u8[8192]{0}', space=vmem, size = 0x2000, scoped, tag = 'output window, operand 1, single buffered']
    #allocation5 [shape = 's32[1]{0}', space=sflag, size = 0x4, scoped, tag = 'scoped memory for tpu_custom_call.1']
    %11 = vsyncpa [#allocation3], 0
    %12 = vsyncpa [#allocation5], 0
    // Predicated region
    $region2: #{tpu_custom_call.1} parent=1 // pred_check
      _
    $region3: #{tpu_custom_call.1} parent=1 // pred_check_branch
      %14 = sbr.rel (0) target = $region5
    $region4: #{tpu_custom_call.1} parent=1 // pred_region
      _
    $region5: #{tpu_custom_call.1} parent=1 // pred_fallthru
      _
    // Predicated region
    $region6: #{tpu_custom_call.1} parent=1 // pred_check
      _
    $region7: #{tpu_custom_call.1} parent=1 // pred_check_branch
      %16 = sbr.rel (0) target = $region9
    $region8: #{tpu_custom_call.1} parent=1 // pred_region
      _
    $region9: #{tpu_custom_call.1} parent=1 // pred_fallthru
      _
    // Predicated region
    $region10: #{tpu_custom_call.1} parent=1 // pred_check
      _
    $region11: #{tpu_custom_call.1} parent=1 // pred_check_branch
      %18 = sbr.rel (0) target = $region13
    $region12: #{tpu_custom_call.1} parent=1 // pred_region
      _
    $region13: #{tpu_custom_call.1} parent=1 // pred_fallthru
      _
    // Predicated region
    $region14: #{tpu_custom_call.1} parent=1 // pred_check
      _
    $region15: #{tpu_custom_call.1} parent=1 // pred_check_branch
      %20 = sbr.rel (0) target = $region17
    $region16: #{tpu_custom_call.1} parent=1 // pred_region
      _
    $region17: #{tpu_custom_call.1} parent=1 // pred_fallthru
      _
    %v21 = vld [vmem:[%s0] sm:$0xff]
    %v22 = vld [vmem:[%s0 + $0x8] sm:$0xff]
    %v23 = vld [vmem:[%s2] sm:$0xff]
    %v24 = vld [vmem:[%s2 + $0x8] sm:$0xff]
    %v25 = vld [vmem:[%s2 + $0x10] sm:$0xff]
    %v26 = vld [vmem:[%s2 + $0x18] sm:$0xff]
    %vm27 = vcmask 261120
    %v29 = vsel %vm27, %v21, 0
    %v32 = vsel %vm27, %v22, 0
    %34 = vmatprep.subr.mxu0 0.0
    %v35 = vand.u32 %v23, 4294901760
    %36 = vmatpush1.msra.mxu0 %v35
    %37 = vmatprep.subr.mxu0 0.0
    %v38 = vand.u32 %v24, 4294901760
    %39 = vmatpush1.msra.mxu0 %v38
    %40 = vmatprep.subr.mxu0 0.0
    %v41 = vand.u32 %v25, 4294901760
    %42 = vmatpush1.msra.mxu0 %v41
    %43 = vmatprep.subr.mxu0 0.0
    %v44 = vand.u32 %v26, 4294901760
    %45 = vmatpush1.msra.mxu0 %v44
    %46 = vmatprep.subr.mxu0 0.0
    %47 = vmatpush1.msra.mxu0 0.0
    %48 = vmatprep.subr.mxu0 0.0
    %49 = vmatpush1.msra.mxu0 0.0
    %50 = vmatprep.subr.mxu0 0.0
    %51 = vmatpush1.msra.mxu0 0.0
    %52 = vmatprep.subr.mxu0 0.0
    %53 = vmatpush1.msra.mxu0 0.0
    %54 = vmatprep.subr.mxu0 0.0
    %55 = vmatpush1.msra.mxu0 0.0
    %56 = vmatprep.subr.mxu0 0.0
    %57 = vmatpush1.msra.mxu0 0.0
    %58 = vmatprep.subr.mxu0 0.0
    %59 = vmatpush1.msra.mxu0 0.0
    %60 = vmatprep.subr.mxu0 0.0
    %61 = vmatpush1.msra.mxu0 0.0
    %62 = vmatprep.subr.mxu0 0.0
    %63 = vmatpush1.msra.mxu0 0.0
    %64 = vmatprep.subr.mxu0 0.0
    %65 = vmatpush1.msra.mxu0 0.0
    %66 = vmatprep.subr.mxu0 0.0
    %67 = vmatpush1.msra.mxu0 0.0
    %68 = vmatprep.subr.mxu0 0.0
    %69 = vmatpush1.msra.mxu0 0.0
    %70 = vmatprep.subr.mxu0 0.0
    %71 = vmatpush1.msra.mxu0 0.0
    %72 = vmatprep.subr.mxu0 0.0
    %73 = vmatpush1.msra.mxu0 0.0
    %74 = vmatprep.subr.mxu0 0.0
    %75 = vmatpush1.msra.mxu0 0.0
    %76 = vmatprep.subr.mxu0 0.0
    %77 = vmatpush1.msra.mxu0 0.0
    %78 = vmatprep.subr.mxu0 0.0
    %79 = vmatpush1.msra.mxu0 0.0
    %80 = vmatprep.subr.mxu0 0.0
    %81 = vmatpush1.msra.mxu0 0.0
    %82 = vmatprep.subr.mxu0 0.0
    %83 = vmatpush1.msra.mxu0 0.0
    %84 = vmatprep.subr.mxu0 0.0
    %85 = vmatpush1.msra.mxu0 0.0
    %86 = vmatprep.subr.mxu0 0.0
    %87 = vmatpush1.msra.mxu0 0.0
    %88 = vmatprep.subr.mxu0 0.0
    %89 = vmatpush1.msra.mxu0 0.0
    %90 = vmatprep.subr.mxu0 0.0
    %91 = vmatpush1.msra.mxu0 0.0
    %92 = vmatprep.subr.mxu0 0.0
    %93 = vmatpush1.msra.mxu0 0.0
    %94 = vmatprep.subr.mxu0 0.0
    %95 = vmatpush1.msra.mxu0 0.0
    %96 = vmatprep.subr.mxu0 0.0
    %97 = vmatpush1.msra.mxu0 0.0
    %98 = vmatprep.subr.mxu0 0.0
    %99 = vmatpush1.msra.mxu0 0.0
    %100 = vmatprep.subr.mxu0 0.0
    %101 = vmatpush1.msra.mxu0 0.0
    %102 = vmatprep.mubr.f32.mxu0 0.0
    %v103 = vand.u32 %v29, 4294901760
    %v104 = vsub.f32 %v29, %v103
    %v105 = vand.u32 %v104, 4294901760
    %v106 = vsub.f32 %v104, %v105
    %v107 = vand.u32 %v106, 4294901760
    %108 = vmatmul.mubr.f32.gmra.mrb[0].mxu0 %v107
    %v109 = vpop.f32.mrb[0].mxu0
    %v110 = vadd.f32 0.0, %v109
    %v111 = vpop.f32.mrb[0].mxu0
    %112 = vmatprep.mubr.f32.mxu0 0.0
    %v113 = vand.u32 %v32, 4294901760
    %v114 = vsub.f32 %v32, %v113
    %v115 = vand.u32 %v114, 4294901760
    %v116 = vsub.f32 %v114, %v115
    %v117 = vand.u32 %v116, 4294901760
    %118 = vmatmul.mubr.f32.gmra.mrb[0].mxu0 %v117
    %v119 = vpop.f32.mrb[0].mxu0
    %v120 = vadd.f32 0.0, %v119
    %v121 = vpop.f32.mrb[0].mxu0
    %122 = vdwg.mxu0
    %123 = vmatprep.subr.mxu0 0.0
    %v124 = vand.u32 %v23, 4294901760
    %v125 = vsub.f32 %v23, %v124
    %v126 = vand.u32 %v125, 4294901760
    %v127 = vsub.f32 %v125, %v126
    %v128 = vand.u32 %v127, 4294901760
    %129 = vmatpush1.msra.mxu0 %v128
    %130 = vmatprep.subr.mxu0 0.0
    %v131 = vand.u32 %v24, 4294901760
    %v132 = vsub.f32 %v24, %v131
    %v133 = vand.u32 %v132, 4294901760
    %v134 = vsub.f32 %v132, %v133
    %v135 = vand.u32 %v134, 4294901760
    %136 = vmatpush1.msra.mxu0 %v135
    %137 = vmatprep.subr.mxu0 0.0
    %v138 = vand.u32 %v25, 4294901760
    %v139 = vsub.f32 %v25, %v138
    %v140 = vand.u32 %v139, 4294901760
    %v141 = vsub.f32 %v139, %v140
    %v142 = vand.u32 %v141, 4294901760
    %143 = vmatpush1.msra.mxu0 %v142
    %144 = vmatprep.subr.mxu0 0.0
    %v145 = vand.u32 %v26, 4294901760
    %v146 = vsub.f32 %v26, %v145
    %v147 = vand.u32 %v146, 4294901760
    %v148 = vsub.f32 %v146, %v147
    %v149 = vand.u32 %v148, 4294901760
    %150 = vmatpush1.msra.mxu0 %v149
    %151 = vmatprep.subr.mxu0 0.0
    %152 = vmatpush1.msra.mxu0 0.0
    %153 = vmatprep.subr.mxu0 0.0
    %154 = vmatpush1.msra.mxu0 0.0
    %155 = vmatprep.subr.mxu0 0.0
    %156 = vmatpush1.msra.mxu0 0.0
    %157 = vmatprep.subr.mxu0 0.0
    %158 = vmatpush1.msra.mxu0 0.0
    %159 = vmatprep.subr.mxu0 0.0
    %160 = vmatpush1.msra.mxu0 0.0
    %161 = vmatprep.subr.mxu0 0.0
    %162 = vmatpush1.msra.mxu0 0.0
    %163 = vmatprep.subr.mxu0 0.0
    %164 = vmatpush1.msra.mxu0 0.0
    %165 = vmatprep.subr.mxu0 0.0
    %166 = vmatpush1.msra.mxu0 0.0
    %167 = vmatprep.subr.mxu0 0.0
    %168 = vmatpush1.msra.mxu0 0.0
    %169 = vmatprep.subr.mxu0 0.0
    %170 = vmatpush1.msra.mxu0 0.0
    %171 = vmatprep.subr.mxu0 0.0
    %172 = vmatpush1.msra.mxu0 0.0
    %173 = vmatprep.subr.mxu0 0.0
    %174 = vmatpush1.msra.mxu0 0.0
    %175 = vmatprep.subr.mxu0 0.0
    %176 = vmatpush1.msra.mxu0 0.0
    %177 = vmatprep.subr.mxu0 0.0
    %178 = vmatpush1.msra.mxu0 0.0
    %179 = vmatprep.subr.mxu0 0.0
    %180 = vmatpush1.msra.mxu0 0.0
    %181 = vmatprep.subr.mxu0 0.0
    %182 = vmatpush1.msra.mxu0 0.0
    %183 = vmatprep.subr.mxu0 0.0
    %184 = vmatpush1.msra.mxu0 0.0
    %185 = vmatprep.subr.mxu0 0.0
    %186 = vmatpush1.msra.mxu0 0.0
    %187 = vmatprep.subr.mxu0 0.0
    %188 = vmatpush1.msra.mxu0 0.0
    %189 = vmatprep.subr.mxu0 0.0
    %190 = vmatpush1.msra.mxu0 0.0
    %191 = vmatprep.subr.mxu0 0.0
    %192 = vmatpush1.msra.mxu0 0.0
    %193 = vmatprep.subr.mxu0 0.0
    %194 = vmatpush1.msra.mxu0 0.0
    %195 = vmatprep.subr.mxu0 0.0
    %196 = vmatpush1.msra.mxu0 0.0
    %197 = vmatprep.subr.mxu0 0.0
    %198 = vmatpush1.msra.mxu0 0.0
    %199 = vmatprep.subr.mxu0 0.0
    %200 = vmatpush1.msra.mxu0 0.0
    %201 = vmatprep.subr.mxu0 0.0
    %202 = vmatpush1.msra.mxu0 0.0
    %203 = vmatprep.subr.mxu0 0.0
    %204 = vmatpush1.msra.mxu0 0.0
    %205 = vmatprep.subr.mxu0 0.0
    %206 = vmatpush1.msra.mxu0 0.0
    %207 = vmatprep.mubr.f32.mxu0 0.0
    %v208 = vand.u32 %v29, 4294901760
    %209 = vmatmul.mubr.f32.gmra.mrb[0].mxu0 %v208
    %v210 = vpop.f32.mrb[0].mxu0
    %v211 = vadd.f32 %v110, %v210
    %v212 = vpop.f32.mrb[0].mxu0
    %213 = vmatprep.mubr.f32.mxu0 0.0
    %v214 = vand.u32 %v32, 4294901760
    %215 = vmatmul.mubr.f32.gmra.mrb[0].mxu0 %v214
    %v216 = vpop.f32.mrb[0].mxu0
    %v217 = vadd.f32 %v120, %v216
    %v218 = vpop.f32.mrb[0].mxu0
    %219 = vdwg.mxu0
    %220 = vmatprep.subr.mxu0 0.0
    %v221 = vand.u32 %v23, 4294901760
    %v222 = vsub.f32 %v23, %v221
    %223 = vmatpush1.msra.mxu0 %v222
    %224 = vmatprep.subr.mxu0 0.0
    %v225 = vand.u32 %v24, 4294901760
    %v226 = vsub.f32 %v24, %v225
    %227 = vmatpush1.msra.mxu0 %v226
    %228 = vmatprep.subr.mxu0 0.0
    %v229 = vand.u32 %v25, 4294901760
    %v230 = vsub.f32 %v25, %v229
    %231 = vmatpush1.msra.mxu0 %v230
    %232 = vmatprep.subr.mxu0 0.0
    %v233 = vand.u32 %v26, 4294901760
    %v234 = vsub.f32 %v26, %v233
    %235 = vmatpush1.msra.mxu0 %v234
    %236 = vmatprep.subr.mxu0 0.0
    %237 = vmatpush1.msra.mxu0 0.0
    %238 = vmatprep.subr.mxu0 0.0
    %239 = vmatpush1.msra.mxu0 0.0
    %240 = vmatprep.subr.mxu0 0.0
    %241 = vmatpush1.msra.mxu0 0.0
    %242 = vmatprep.subr.mxu0 0.0
    %243 = vmatpush1.msra.mxu0 0.0
    %244 = vmatprep.subr.mxu0 0.0
    %245 = vmatpush1.msra.mxu0 0.0
    %246 = vmatprep.subr.mxu0 0.0
    %247 = vmatpush1.msra.mxu0 0.0
    %248 = vmatprep.subr.mxu0 0.0
    %249 = vmatpush1.msra.mxu0 0.0
    %250 = vmatprep.subr.mxu0 0.0
    %251 = vmatpush1.msra.mxu0 0.0
    %252 = vmatprep.subr.mxu0 0.0
    %253 = vmatpush1.msra.mxu0 0.0
    %254 = vmatprep.subr.mxu0 0.0
    %255 = vmatpush1.msra.mxu0 0.0
    %256 = vmatprep.subr.mxu0 0.0
    %257 = vmatpush1.msra.mxu0 0.0
    %258 = vmatprep.subr.mxu0 0.0
    %259 = vmatpush1.msra.mxu0 0.0
    %260 = vmatprep.subr.mxu0 0.0
    %261 = vmatpush1.msra.mxu0 0.0
    %262 = vmatprep.subr.mxu0 0.0
    %263 = vmatpush1.msra.mxu0 0.0
    %264 = vmatprep.subr.mxu0 0.0
    %265 = vmatpush1.msra.mxu0 0.0
    %266 = vmatprep.subr.mxu0 0.0
    %267 = vmatpush1.msra.mxu0 0.0
    %268 = vmatprep.subr.mxu0 0.0
    %269 = vmatpush1.msra.mxu0 0.0
    %270 = vmatprep.subr.mxu0 0.0
    %271 = vmatpush1.msra.mxu0 0.0
    %272 = vmatprep.subr.mxu0 0.0
    %273 = vmatpush1.msra.mxu0 0.0
    %274 = vmatprep.subr.mxu0 0.0
    %275 = vmatpush1.msra.mxu0 0.0
    %276 = vmatprep.subr.mxu0 0.0
    %277 = vmatpush1.msra.mxu0 0.0
    %278 = vmatprep.subr.mxu0 0.0
    %279 = vmatpush1.msra.mxu0 0.0
    %280 = vmatprep.subr.mxu0 0.0
    %281 = vmatpush1.msra.mxu0 0.0
    %282 = vmatprep.subr.mxu0 0.0
    %283 = vmatpush1.msra.mxu0 0.0
    %284 = vmatprep.subr.mxu0 0.0
    %285 = vmatpush1.msra.mxu0 0.0
    %286 = vmatprep.subr.mxu0 0.0
    %287 = vmatpush1.msra.mxu0 0.0
    %288 = vmatprep.subr.mxu0 0.0
    %289 = vmatpush1.msra.mxu0 0.0
    %290 = vmatprep.subr.mxu0 0.0
    %291 = vmatpush1.msra.mxu0 0.0
    %292 = vmatprep.mubr.f32.mxu0 0.0
    %v293 = vand.u32 %v29, 4294901760
    %v294 = vsub.f32 %v29, %v293
    %295 = vmatmul.mubr.f32.gmra.mrb[0].mxu0 %v294
    %v296 = vpop.f32.mrb[0].mxu0
    %v297 = vadd.f32 %v211, %v296
    %v298 = vpop.f32.mrb[0].mxu0
    %299 = vmatprep.mubr.f32.mxu0 0.0
    %v300 = vand.u32 %v32, 4294901760
    %v301 = vsub.f32 %v32, %v300
    %302 = vmatmul.mubr.f32.gmra.mrb[0].mxu0 %v301
    %v303 = vpop.f32.mrb[0].mxu0
    %v304 = vadd.f32 %v217, %v303
    %v305 = vpop.f32.mrb[0].mxu0
    %306 = vdwg.mxu0
    %307 = vmatprep.subr.mxu0 0.0
    %v308 = vand.u32 %v23, 4294901760
    %309 = vmatpush1.msra.mxu0 %v308
    %310 = vmatprep.subr.mxu0 0.0
    %v311 = vand.u32 %v24, 4294901760
    %312 = vmatpush1.msra.mxu0 %v311
    %313 = vmatprep.subr.mxu0 0.0
    %v314 = vand.u32 %v25, 4294901760
    %315 = vmatpush1.msra.mxu0 %v314
    %316 = vmatprep.subr.mxu0 0.0
    %v317 = vand.u32 %v26, 4294901760
    %318 = vmatpush1.msra.mxu0 %v317
    %319 = vmatprep.subr.mxu0 0.0
    %320 = vmatpush1.msra.mxu0 0.0
    %321 = vmatprep.subr.mxu0 0.0
    %322 = vmatpush1.msra.mxu0 0.0
    %323 = vmatprep.subr.mxu0 0.0
    %324 = vmatpush1.msra.mxu0 0.0
    %325 = vmatprep.subr.mxu0 0.0
    %326 = vmatpush1.msra.mxu0 0.0
    %327 = vmatprep.subr.mxu0 0.0
    %328 = vmatpush1.msra.mxu0 0.0
    %329 = vmatprep.subr.mxu0 0.0
    %330 = vmatpush1.msra.mxu0 0.0
    %331 = vmatprep.subr.mxu0 0.0
    %332 = vmatpush1.msra.mxu0 0.0
    %333 = vmatprep.subr.mxu0 0.0
    %334 = vmatpush1.msra.mxu0 0.0
    %335 = vmatprep.subr.mxu0 0.0
    %336 = vmatpush1.msra.mxu0 0.0
    %337 = vmatprep.subr.mxu0 0.0
    %338 = vmatpush1.msra.mxu0 0.0
    %339 = vmatprep.subr.mxu0 0.0
    %340 = vmatpush1.msra.mxu0 0.0
    %341 = vmatprep.subr.mxu0 0.0
    %342 = vmatpush1.msra.mxu0 0.0
    %343 = vmatprep.subr.mxu0 0.0
    %344 = vmatpush1.msra.mxu0 0.0
    %345 = vmatprep.subr.mxu0 0.0
    %346 = vmatpush1.msra.mxu0 0.0
    %347 = vmatprep.subr.mxu0 0.0
    %348 = vmatpush1.msra.mxu0 0.0
    %349 = vmatprep.subr.mxu0 0.0
    %350 = vmatpush1.msra.mxu0 0.0
    %351 = vmatprep.subr.mxu0 0.0
    %352 = vmatpush1.msra.mxu0 0.0
    %353 = vmatprep.subr.mxu0 0.0
    %354 = vmatpush1.msra.mxu0 0.0
    %355 = vmatprep.subr.mxu0 0.0
    %356 = vmatpush1.msra.mxu0 0.0
    %357 = vmatprep.subr.mxu0 0.0
    %358 = vmatpush1.msra.mxu0 0.0
    %359 = vmatprep.subr.mxu0 0.0
    %360 = vmatpush1.msra.mxu0 0.0
    %361 = vmatprep.subr.mxu0 0.0
    %362 = vmatpush1.msra.mxu0 0.0
    %363 = vmatprep.subr.mxu0 0.0
    %364 = vmatpush1.msra.mxu0 0.0
    %365 = vmatprep.subr.mxu0 0.0
    %366 = vmatpush1.msra.mxu0 0.0
    %367 = vmatprep.subr.mxu0 0.0
    %368 = vmatpush1.msra.mxu0 0.0
    %369 = vmatprep.subr.mxu0 0.0
    %370 = vmatpush1.msra.mxu0 0.0
    %371 = vmatprep.subr.mxu0 0.0
    %372 = vmatpush1.msra.mxu0 0.0
    %373 = vmatprep.subr.mxu0 0.0
    %374 = vmatpush1.msra.mxu0 0.0
    %375 = vmatprep.mubr.f32.mxu0 0.0
    %v376 = vand.u32 %v29, 4294901760
    %v377 = vsub.f32 %v29, %v376
    %v378 = vand.u32 %v377, 4294901760
    %379 = vmatmul.mubr.f32.gmra.mrb[0].mxu0 %v378
    %v380 = vpop.f32.mrb[0].mxu0
    %v381 = vadd.f32 %v297, %v380
    %v382 = vpop.f32.mrb[0].mxu0
    %383 = vmatprep.mubr.f32.mxu0 0.0
    %v384 = vand.u32 %v32, 4294901760
    %v385 = vsub.f32 %v32, %v384
    %v386 = vand.u32 %v385, 4294901760
    %387 = vmatmul.mubr.f32.gmra.mrb[0].mxu0 %v386
    %v388 = vpop.f32.mrb[0].mxu0
    %v389 = vadd.f32 %v304, %v388
    %v390 = vpop.f32.mrb[0].mxu0
    %391 = vdwg.mxu0
    %392 = vmatprep.subr.mxu0 0.0
    %v393 = vand.u32 %v23, 4294901760
    %v394 = vsub.f32 %v23, %v393
    %v395 = vand.u32 %v394, 4294901760
    %396 = vmatpush1.msra.mxu0 %v395
    %397 = vmatprep.subr.mxu0 0.0
    %v398 = vand.u32 %v24, 4294901760
    %v399 = vsub.f32 %v24, %v398
    %v400 = vand.u32 %v399, 4294901760
    %401 = vmatpush1.msra.mxu0 %v400
    %402 = vmatprep.subr.mxu0 0.0
    %v403 = vand.u32 %v25, 4294901760
    %v404 = vsub.f32 %v25, %v403
    %v405 = vand.u32 %v404, 4294901760
    %406 = vmatpush1.msra.mxu0 %v405
    %407 = vmatprep.subr.mxu0 0.0
    %v408 = vand.u32 %v26, 4294901760
    %v409 = vsub.f32 %v26, %v408
    %v410 = vand.u32 %v409, 4294901760
    %411 = vmatpush1.msra.mxu0 %v410
    %412 = vmatprep.subr.mxu0 0.0
    %413 = vmatpush1.msra.mxu0 0.0
    %414 = vmatprep.subr.mxu0 0.0
    %415 = vmatpush1.msra.mxu0 0.0
    %416 = vmatprep.subr.mxu0 0.0
    %417 = vmatpush1.msra.mxu0 0.0
    %418 = vmatprep.subr.mxu0 0.0
    %419 = vmatpush1.msra.mxu0 0.0
    %420 = vmatprep.subr.mxu0 0.0
    %421 = vmatpush1.msra.mxu0 0.0
    %422 = vmatprep.subr.mxu0 0.0
    %423 = vmatpush1.msra.mxu0 0.0
    %424 = vmatprep.subr.mxu0 0.0
    %425 = vmatpush1.msra.mxu0 0.0
    %426 = vmatprep.subr.mxu0 0.0
    %427 = vmatpush1.msra.mxu0 0.0
    %428 = vmatprep.subr.mxu0 0.0
    %429 = vmatpush1.msra.mxu0 0.0
    %430 = vmatprep.subr.mxu0 0.0
    %431 = vmatpush1.msra.mxu0 0.0
    %432 = vmatprep.subr.mxu0 0.0
    %433 = vmatpush1.msra.mxu0 0.0
    %434 = vmatprep.subr.mxu0 0.0
    %435 = vmatpush1.msra.mxu0 0.0
    %436 = vmatprep.subr.mxu0 0.0
    %437 = vmatpush1.msra.mxu0 0.0
    %438 = vmatprep.subr.mxu0 0.0
    %439 = vmatpush1.msra.mxu0 0.0
    %440 = vmatprep.subr.mxu0 0.0
    %441 = vmatpush1.msra.mxu0 0.0
    %442 = vmatprep.subr.mxu0 0.0
    %443 = vmatpush1.msra.mxu0 0.0
    %444 = vmatprep.subr.mxu0 0.0
    %445 = vmatpush1.msra.mxu0 0.0
    %446 = vmatprep.subr.mxu0 0.0
    %447 = vmatpush1.msra.mxu0 0.0
    %448 = vmatprep.subr.mxu0 0.0
    %449 = vmatpush1.msra.mxu0 0.0
    %450 = vmatprep.subr.mxu0 0.0
    %451 = vmatpush1.msra.mxu0 0.0
    %452 = vmatprep.subr.mxu0 0.0
    %453 = vmatpush1.msra.mxu0 0.0
    %454 = vmatprep.subr.mxu0 0.0
    %455 = vmatpush1.msra.mxu0 0.0
    %456 = vmatprep.subr.mxu0 0.0
    %457 = vmatpush1.msra.mxu0 0.0
    %458 = vmatprep.subr.mxu0 0.0
    %459 = vmatpush1.msra.mxu0 0.0
    %460 = vmatprep.subr.mxu0 0.0
    %461 = vmatpush1.msra.mxu0 0.0
    %462 = vmatprep.subr.mxu0 0.0
    %463 = vmatpush1.msra.mxu0 0.0
    %464 = vmatprep.subr.mxu0 0.0
    %465 = vmatpush1.msra.mxu0 0.0
    %466 = vmatprep.subr.mxu0 0.0
    %467 = vmatpush1.msra.mxu0 0.0
    %468 = vmatprep.mubr.f32.mxu0 0.0
    %v469 = vand.u32 %v29, 4294901760
    %470 = vmatmul.mubr.f32.gmra.mrb[0].mxu0 %v469
    %v471 = vpop.f32.mrb[0].mxu0
    %v472 = vadd.f32 %v381, %v471
    %v473 = vpop.f32.mrb[0].mxu0
    %474 = vmatprep.mubr.f32.mxu0 0.0
    %v475 = vand.u32 %v32, 4294901760
    %476 = vmatmul.mubr.f32.gmra.mrb[0].mxu0 %v475
    %v477 = vpop.f32.mrb[0].mxu0
    %v478 = vadd.f32 %v389, %v477
    %v479 = vpop.f32.mrb[0].mxu0
    %480 = vdwg.mxu0
    %481 = vmatprep.subr.mxu0 0.0
    %v482 = vand.u32 %v23, 4294901760
    %483 = vmatpush1.msra.mxu0 %v482
    %484 = vmatprep.subr.mxu0 0.0
    %v485 = vand.u32 %v24, 4294901760
    %486 = vmatpush1.msra.mxu0 %v485
    %487 = vmatprep.subr.mxu0 0.0
    %v488 = vand.u32 %v25, 4294901760
    %489 = vmatpush1.msra.mxu0 %v488
    %490 = vmatprep.subr.mxu0 0.0
    %v491 = vand.u32 %v26, 4294901760
    %492 = vmatpush1.msra.mxu0 %v491
    %493 = vmatprep.subr.mxu0 0.0
    %494 = vmatpush1.msra.mxu0 0.0
    %495 = vmatprep.subr.mxu0 0.0
    %496 = vmatpush1.msra.mxu0 0.0
    %497 = vmatprep.subr.mxu0 0.0
    %498 = vmatpush1.msra.mxu0 0.0
    %499 = vmatprep.subr.mxu0 0.0
    %500 = vmatpush1.msra.mxu0 0.0
    %501 = vmatprep.subr.mxu0 0.0
    %502 = vmatpush1.msra.mxu0 0.0
    %503 = vmatprep.subr.mxu0 0.0
    %504 = vmatpush1.msra.mxu0 0.0
    %505 = vmatprep.subr.mxu0 0.0
    %506 = vmatpush1.msra.mxu0 0.0
    %507 = vmatprep.subr.mxu0 0.0
    %508 = vmatpush1.msra.mxu0 0.0
    %509 = vmatprep.subr.mxu0 0.0
    %510 = vmatpush1.msra.mxu0 0.0
    %511 = vmatprep.subr.mxu0 0.0
    %512 = vmatpush1.msra.mxu0 0.0
    %513 = vmatprep.subr.mxu0 0.0
    %514 = vmatpush1.msra.mxu0 0.0
    %515 = vmatprep.subr.mxu0 0.0
    %516 = vmatpush1.msra.mxu0 0.0
    %517 = vmatprep.subr.mxu0 0.0
    %518 = vmatpush1.msra.mxu0 0.0
    %519 = vmatprep.subr.mxu0 0.0
    %520 = vmatpush1.msra.mxu0 0.0
    %521 = vmatprep.subr.mxu0 0.0
    %522 = vmatpush1.msra.mxu0 0.0
    %523 = vmatprep.subr.mxu0 0.0
    %524 = vmatpush1.msra.mxu0 0.0
    %525 = vmatprep.subr.mxu0 0.0
    %526 = vmatpush1.msra.mxu0 0.0
    %527 = vmatprep.subr.mxu0 0.0
    %528 = vmatpush1.msra.mxu0 0.0
    %529 = vmatprep.subr.mxu0 0.0
    %530 = vmatpush1.msra.mxu0 0.0
    %531 = vmatprep.subr.mxu0 0.0
    %532 = vmatpush1.msra.mxu0 0.0
    %533 = vmatprep.subr.mxu0 0.0
    %534 = vmatpush1.msra.mxu0 0.0
    %535 = vmatprep.subr.mxu0 0.0
    %536 = vmatpush1.msra.mxu0 0.0
    %537 = vmatprep.subr.mxu0 0.0
    %538 = vmatpush1.msra.mxu0 0.0
    %539 = vmatprep.subr.mxu0 0.0
    %540 = vmatpush1.msra.mxu0 0.0
    %541 = vmatprep.subr.mxu0 0.0
    %542 = vmatpush1.msra.mxu0 0.0
    %543 = vmatprep.subr.mxu0 0.0
    %544 = vmatpush1.msra.mxu0 0.0
    %545 = vmatprep.subr.mxu0 0.0
    %546 = vmatpush1.msra.mxu0 0.0
    %547 = vmatprep.subr.mxu0 0.0
    %548 = vmatpush1.msra.mxu0 0.0
    %549 = vmatprep.mubr.f32.mxu0 0.0
    %v550 = vand.u32 %v29, 4294901760
    %551 = vmatmul.mubr.f32.gmra.mrb[0].mxu0 %v550
    %v552 = vpop.f32.mrb[0].mxu0
    %v553 = vadd.f32 %v472, %v552
    %v554 = vpop.f32.mrb[0].mxu0
    %555 = vmatprep.mubr.f32.mxu0 0.0
    %v556 = vand.u32 %v32, 4294901760
    %557 = vmatmul.mubr.f32.gmra.mrb[0].mxu0 %v556
    %v558 = vpop.f32.mrb[0].mxu0
    %v559 = vadd.f32 %v478, %v558
    %v560 = vpop.f32.mrb[0].mxu0
    %561 = vdwg.mxu0
    %v562 = vmul.f32 %v553, 0.25
    %v563 = vmul.f32 %v559, 0.25
    %v564 = vld [vmem:[%s3] sm:$0xff]
    %v565 = vld [vmem:[%s3 + $0x8] sm:$0xff]
    %v566 = vld [vmem:[%s3 + $0x10] sm:$0xff]
    %v567 = vld [vmem:[%s3 + $0x18] sm:$0xff]
    %568 = vmatprep.subr.mxu0 0.0
    %v569 = vand.u32 %v564, 4294901760
    %570 = vmatpush1.msra.mxu0 %v569
    %571 = vmatprep.subr.mxu0 0.0
    %v572 = vand.u32 %v565, 4294901760
    %573 = vmatpush1.msra.mxu0 %v572
    %574 = vmatprep.subr.mxu0 0.0
    %v575 = vand.u32 %v566, 4294901760
    %576 = vmatpush1.msra.mxu0 %v575
    %577 = vmatprep.subr.mxu0 0.0
    %v578 = vand.u32 %v567, 4294901760
    %579 = vmatpush1.msra.mxu0 %v578
    %580 = vmatprep.subr.mxu0 0.0
    %581 = vmatpush1.msra.mxu0 0.0
    %582 = vmatprep.subr.mxu0 0.0
    %583 = vmatpush1.msra.mxu0 0.0
    %584 = vmatprep.subr.mxu0 0.0
    %585 = vmatpush1.msra.mxu0 0.0
    %586 = vmatprep.subr.mxu0 0.0
    %587 = vmatpush1.msra.mxu0 0.0
    %588 = vmatprep.subr.mxu0 0.0
    %589 = vmatpush1.msra.mxu0 0.0
    %590 = vmatprep.subr.mxu0 0.0
    %591 = vmatpush1.msra.mxu0 0.0
    %592 = vmatprep.subr.mxu0 0.0
    %593 = vmatpush1.msra.mxu0 0.0
    %594 = vmatprep.subr.mxu0 0.0
    %595 = vmatpush1.msra.mxu0 0.0
    %596 = vmatprep.subr.mxu0 0.0
    %597 = vmatpush1.msra.mxu0 0.0
    %598 = vmatprep.subr.mxu0 0.0
    %599 = vmatpush1.msra.mxu0 0.0
    %600 = vmatprep.subr.mxu0 0.0
    %601 = vmatpush1.msra.mxu0 0.0
    %602 = vmatprep.subr.mxu0 0.0
    %603 = vmatpush1.msra.mxu0 0.0
    %604 = vmatprep.subr.mxu0 0.0
    %605 = vmatpush1.msra.mxu0 0.0
    %606 = vmatprep.subr.mxu0 0.0
    %607 = vmatpush1.msra.mxu0 0.0
    %608 = vmatprep.subr.mxu0 0.0
    %609 = vmatpush1.msra.mxu0 0.0
    %610 = vmatprep.subr.mxu0 0.0
    %611 = vmatpush1.msra.mxu0 0.0
    %612 = vmatprep.subr.mxu0 0.0
    %613 = vmatpush1.msra.mxu0 0.0
    %614 = vmatprep.subr.mxu0 0.0
    %615 = vmatpush1.msra.mxu0 0.0
    %616 = vmatprep.subr.mxu0 0.0
    %617 = vmatpush1.msra.mxu0 0.0
    %618 = vmatprep.subr.mxu0 0.0
    %619 = vmatpush1.msra.mxu0 0.0
    %620 = vmatprep.subr.mxu0 0.0
    %621 = vmatpush1.msra.mxu0 0.0
    %622 = vmatprep.subr.mxu0 0.0
    %623 = vmatpush1.msra.mxu0 0.0
    %624 = vmatprep.subr.mxu0 0.0
    %625 = vmatpush1.msra.mxu0 0.0
    %626 = vmatprep.subr.mxu0 0.0
    %627 = vmatpush1.msra.mxu0 0.0
    %628 = vmatprep.subr.mxu0 0.0
    %629 = vmatpush1.msra.mxu0 0.0
    %630 = vmatprep.subr.mxu0 0.0
    %631 = vmatpush1.msra.mxu0 0.0
    %632 = vmatprep.subr.mxu0 0.0
    %633 = vmatpush1.msra.mxu0 0.0
    %634 = vmatprep.subr.mxu0 0.0
    %635 = vmatpush1.msra.mxu0 0.0
    %636 = vmatprep.mubr.f32.mxu0 0.0
    %v637 = vand.u32 %v29, 4294901760
    %v638 = vsub.f32 %v29, %v637
    %v639 = vand.u32 %v638, 4294901760
    %v640 = vsub.f32 %v638, %v639
    %v641 = vand.u32 %v640, 4294901760
    %642 = vmatmul.mubr.f32.gmra.mrb[0].mxu0 %v641
    %v643 = vpop.f32.mrb[0].mxu0
    %v644 = vadd.f32 0.0, %v643
    %v645 = vpop.f32.mrb[0].mxu0
    %646 = vmatprep.mubr.f32.mxu0 0.0
    %v647 = vand.u32 %v32, 4294901760
    %v648 = vsub.f32 %v32, %v647
    %v649 = vand.u32 %v648, 4294901760
    %v650 = vsub.f32 %v648, %v649
    %v651 = vand.u32 %v650, 4294901760
    %652 = vmatmul.mubr.f32.gmra.mrb[0].mxu0 %v651
    %v653 = vpop.f32.mrb[0].mxu0
    %v654 = vadd.f32 0.0, %v653
    %v655 = vpop.f32.mrb[0].mxu0
    %656 = vdwg.mxu0
    %657 = vmatprep.subr.mxu0 0.0
    %v658 = vand.u32 %v564, 4294901760
    %v659 = vsub.f32 %v564, %v658
    %v660 = vand.u32 %v659, 4294901760
    %v661 = vsub.f32 %v659, %v660
    %v662 = vand.u32 %v661, 4294901760
    %663 = vmatpush1.msra.mxu0 %v662
    %664 = vmatprep.subr.mxu0 0.0
    %v665 = vand.u32 %v565, 4294901760
    %v666 = vsub.f32 %v565, %v665
    %v667 = vand.u32 %v666, 4294901760
    %v668 = vsub.f32 %v666, %v667
    %v669 = vand.u32 %v668, 4294901760
    %670 = vmatpush1.msra.mxu0 %v669
    %671 = vmatprep.subr.mxu0 0.0
    %v672 = vand.u32 %v566, 4294901760
    %v673 = vsub.f32 %v566, %v672
    %v674 = vand.u32 %v673, 4294901760
    %v675 = vsub.f32 %v673, %v674
    %v676 = vand.u32 %v675, 4294901760
    %677 = vmatpush1.msra.mxu0 %v676
    %678 = vmatprep.subr.mxu0 0.0
    %v679 = vand.u32 %v567, 4294901760
    %v680 = vsub.f32 %v567, %v679
    %v681 = vand.u32 %v680, 4294901760
    %v682 = vsub.f32 %v680, %v681
    %v683 = vand.u32 %v682, 4294901760
    %684 = vmatpush1.msra.mxu0 %v683
    %685 = vmatprep.subr.mxu0 0.0
    %686 = vmatpush1.msra.mxu0 0.0
    %687 = vmatprep.subr.mxu0 0.0
    %688 = vmatpush1.msra.mxu0 0.0
    %689 = vmatprep.subr.mxu0 0.0
    %690 = vmatpush1.msra.mxu0 0.0
    %691 = vmatprep.subr.mxu0 0.0
    %692 = vmatpush1.msra.mxu0 0.0
    %693 = vmatprep.subr.mxu0 0.0
    %694 = vmatpush1.msra.mxu0 0.0
    %695 = vmatprep.subr.mxu0 0.0
    %696 = vmatpush1.msra.mxu0 0.0
    %697 = vmatprep.subr.mxu0 0.0
    %698 = vmatpush1.msra.mxu0 0.0
    %699 = vmatprep.subr.mxu0 0.0
    %700 = vmatpush1.msra.mxu0 0.0
    %701 = vmatprep.subr.mxu0 0.0
    %702 = vmatpush1.msra.mxu0 0.0
    %703 = vmatprep.subr.mxu0 0.0
    %704 = vmatpush1.msra.mxu0 0.0
    %705 = vmatprep.subr.mxu0 0.0
    %706 = vmatpush1.msra.mxu0 0.0
    %707 = vmatprep.subr.mxu0 0.0
    %708 = vmatpush1.msra.mxu0 0.0
    %709 = vmatprep.subr.mxu0 0.0
    %710 = vmatpush1.msra.mxu0 0.0
    %711 = vmatprep.subr.mxu0 0.0
    %712 = vmatpush1.msra.mxu0 0.0
    %713 = vmatprep.subr.mxu0 0.0
    %714 = vmatpush1.msra.mxu0 0.0
    %715 = vmatprep.subr.mxu0 0.0
    %716 = vmatpush1.msra.mxu0 0.0
    %717 = vmatprep.subr.mxu0 0.0
    %718 = vmatpush1.msra.mxu0 0.0
    %719 = vmatprep.subr.mxu0 0.0
    %720 = vmatpush1.msra.mxu0 0.0
    %721 = vmatprep.subr.mxu0 0.0
    %722 = vmatpush1.msra.mxu0 0.0
    %723 = vmatprep.subr.mxu0 0.0
    %724 = vmatpush1.msra.mxu0 0.0
    %725 = vmatprep.subr.mxu0 0.0
    %726 = vmatpush1.msra.mxu0 0.0
    %727 = vmatprep.subr.mxu0 0.0
    %728 = vmatpush1.msra.mxu0 0.0
    %729 = vmatprep.subr.mxu0 0.0
    %730 = vmatpush1.msra.mxu0 0.0
    %731 = vmatprep.subr.mxu0 0.0
    %732 = vmatpush1.msra.mxu0 0.0
    %733 = vmatprep.subr.mxu0 0.0
    %734 = vmatpush1.msra.mxu0 0.0
    %735 = vmatprep.subr.mxu0 0.0
    %736 = vmatpush1.msra.mxu0 0.0
    %737 = vmatprep.subr.mxu0 0.0
    %738 = vmatpush1.msra.mxu0 0.0
    %739 = vmatprep.subr.mxu0 0.0
    %740 = vmatpush1.msra.mxu0 0.0
    %741 = vmatprep.mubr.f32.mxu0 0.0
    %v742 = vand.u32 %v29, 4294901760
    %743 = vmatmul.mubr.f32.gmra.mrb[0].mxu0 %v742
    %v744 = vpop.f32.mrb[0].mxu0
    %v745 = vadd.f32 %v644, %v744
    %v746 = vpop.f32.mrb[0].mxu0
    %747 = vmatprep.mubr.f32.mxu0 0.0
    %v748 = vand.u32 %v32, 4294901760
    %749 = vmatmul.mubr.f32.gmra.mrb[0].mxu0 %v748
    %v750 = vpop.f32.mrb[0].mxu0
    %v751 = vadd.f32 %v654, %v750
    %v752 = vpop.f32.mrb[0].mxu0
    %753 = vdwg.mxu0
    %754 = vmatprep.subr.mxu0 0.0
    %v755 = vand.u32 %v564, 4294901760
    %v756 = vsub.f32 %v564, %v755
    %757 = vmatpush1.msra.mxu0 %v756
    %758 = vmatprep.subr.mxu0 0.0
    %v759 = vand.u32 %v565, 4294901760
    %v760 = vsub.f32 %v565, %v759
    %761 = vmatpush1.msra.mxu0 %v760
    %762 = vmatprep.subr.mxu0 0.0
    %v763 = vand.u32 %v566, 4294901760
    %v764 = vsub.f32 %v566, %v763
    %765 = vmatpush1.msra.mxu0 %v764
    %766 = vmatprep.subr.mxu0 0.0
    %v767 = vand.u32 %v567, 4294901760
    %v768 = vsub.f32 %v567, %v767
    %769 = vmatpush1.msra.mxu0 %v768
    %770 = vmatprep.subr.mxu0 0.0
    %771 = vmatpush1.msra.mxu0 0.0
    %772 = vmatprep.subr.mxu0 0.0
    %773 = vmatpush1.msra.mxu0 0.0
    %774 = vmatprep.subr.mxu0 0.0
    %775 = vmatpush1.msra.mxu0 0.0
    %776 = vmatprep.subr.mxu0 0.0
    %777 = vmatpush1.msra.mxu0 0.0
    %778 = vmatprep.subr.mxu0 0.0
    %779 = vmatpush1.msra.mxu0 0.0
    %780 = vmatprep.subr.mxu0 0.0
    %781 = vmatpush1.msra.mxu0 0.0
    %782 = vmatprep.subr.mxu0 0.0
    %783 = vmatpush1.msra.mxu0 0.0
    %784 = vmatprep.subr.mxu0 0.0
    %785 = vmatpush1.msra.mxu0 0.0
    %786 = vmatprep.subr.mxu0 0.0
    %787 = vmatpush1.msra.mxu0 0.0
    %788 = vmatprep.subr.mxu0 0.0
    %789 = vmatpush1.msra.mxu0 0.0
    %790 = vmatprep.subr.mxu0 0.0
    %791 = vmatpush1.msra.mxu0 0.0
    %792 = vmatprep.subr.mxu0 0.0
    %793 = vmatpush1.msra.mxu0 0.0
    %794 = vmatprep.subr.mxu0 0.0
    %795 = vmatpush1.msra.mxu0 0.0
    %796 = vmatprep.subr.mxu0 0.0
    %797 = vmatpush1.msra.mxu0 0.0
    %798 = vmatprep.subr.mxu0 0.0
    %799 = vmatpush1.msra.mxu0 0.0
    %800 = vmatprep.subr.mxu0 0.0
    %801 = vmatpush1.msra.mxu0 0.0
    %802 = vmatprep.subr.mxu0 0.0
    %803 = vmatpush1.msra.mxu0 0.0
    %804 = vmatprep.subr.mxu0 0.0
    %805 = vmatpush1.msra.mxu0 0.0
    %806 = vmatprep.subr.mxu0 0.0
    %807 = vmatpush1.msra.mxu0 0.0
    %808 = vmatprep.subr.mxu0 0.0
    %809 = vmatpush1.msra.mxu0 0.0
    %810 = vmatprep.subr.mxu0 0.0
    %811 = vmatpush1.msra.mxu0 0.0
    %812 = vmatprep.subr.mxu0 0.0
    %813 = vmatpush1.msra.mxu0 0.0
    %814 = vmatprep.subr.mxu0 0.0
    %815 = vmatpush1.msra.mxu0 0.0
    %816 = vmatprep.subr.mxu0 0.0
    %817 = vmatpush1.msra.mxu0 0.0
    %818 = vmatprep.subr.mxu0 0.0
    %819 = vmatpush1.msra.mxu0 0.0
    %820 = vmatprep.subr.mxu0 0.0
    %821 = vmatpush1.msra.mxu0 0.0
    %822 = vmatprep.subr.mxu0 0.0
    %823 = vmatpush1.msra.mxu0 0.0
    %824 = vmatprep.subr.mxu0 0.0
    %825 = vmatpush1.msra.mxu0 0.0
    %826 = vmatprep.mubr.f32.mxu0 0.0
    %v827 = vand.u32 %v29, 4294901760
    %v828 = vsub.f32 %v29, %v827
    %829 = vmatmul.mubr.f32.gmra.mrb[0].mxu0 %v828
    %v830 = vpop.f32.mrb[0].mxu0
    %v831 = vadd.f32 %v745, %v830
    %v832 = vpop.f32.mrb[0].mxu0
    %833 = vmatprep.mubr.f32.mxu0 0.0
    %v834 = vand.u32 %v32, 4294901760
    %v835 = vsub.f32 %v32, %v834
    %836 = vmatmul.mubr.f32.gmra.mrb[0].mxu0 %v835
    %v837 = vpop.f32.mrb[0].mxu0
    %v838 = vadd.f32 %v751, %v837
    %v839 = vpop.f32.mrb[0].mxu0
    %840 = vdwg.mxu0
    %841 = vmatprep.subr.mxu0 0.0
    %v842 = vand.u32 %v564, 4294901760
    %843 = vmatpush1.msra.mxu0 %v842
    %844 = vmatprep.subr.mxu0 0.0
    %v845 = vand.u32 %v565, 4294901760
    %846 = vmatpush1.msra.mxu0 %v845
    %847 = vmatprep.subr.mxu0 0.0
    %v848 = vand.u32 %v566, 4294901760
    %849 = vmatpush1.msra.mxu0 %v848
    %850 = vmatprep.subr.mxu0 0.0
    %v851 = vand.u32 %v567, 4294901760
    %852 = vmatpush1.msra.mxu0 %v851
    %853 = vmatprep.subr.mxu0 0.0
    %854 = vmatpush1.msra.mxu0 0.0
    %855 = vmatprep.subr.mxu0 0.0
    %856 = vmatpush1.msra.mxu0 0.0
    %857 = vmatprep.subr.mxu0 0.0
    %858 = vmatpush1.msra.mxu0 0.0
    %859 = vmatprep.subr.mxu0 0.0
    %860 = vmatpush1.msra.mxu0 0.0
    %861 = vmatprep.subr.mxu0 0.0
    %862 = vmatpush1.msra.mxu0 0.0
    %863 = vmatprep.subr.mxu0 0.0
    %864 = vmatpush1.msra.mxu0 0.0
    %865 = vmatprep.subr.mxu0 0.0
    %866 = vmatpush1.msra.mxu0 0.0
    %867 = vmatprep.subr.mxu0 0.0
    %868 = vmatpush1.msra.mxu0 0.0
    %869 = vmatprep.subr.mxu0 0.0
    %870 = vmatpush1.msra.mxu0 0.0
    %871 = vmatprep.subr.mxu0 0.0
    %872 = vmatpush1.msra.mxu0 0.0
    %873 = vmatprep.subr.mxu0 0.0
    %874 = vmatpush1.msra.mxu0 0.0
    %875 = vmatprep.subr.mxu0 0.0
    %876 = vmatpush1.msra.mxu0 0.0
    %877 = vmatprep.subr.mxu0 0.0
    %878 = vmatpush1.msra.mxu0 0.0
    %879 = vmatprep.subr.mxu0 0.0
    %880 = vmatpush1.msra.mxu0 0.0
    %881 = vmatprep.subr.mxu0 0.0
    %882 = vmatpush1.msra.mxu0 0.0
    %883 = vmatprep.subr.mxu0 0.0
    %884 = vmatpush1.msra.mxu0 0.0
    %885 = vmatprep.subr.mxu0 0.0
    %886 = vmatpush1.msra.mxu0 0.0
    %887 = vmatprep.subr.mxu0 0.0
    %888 = vmatpush1.msra.mxu0 0.0
    %889 = vmatprep.subr.mxu0 0.0
    %890 = vmatpush1.msra.mxu0 0.0
    %891 = vmatprep.subr.mxu0 0.0
    %892 = vmatpush1.msra.mxu0 0.0
    %893 = vmatprep.subr.mxu0 0.0
    %894 = vmatpush1.msra.mxu0 0.0
    %895 = vmatprep.subr.mxu0 0.0
    %896 = vmatpush1.msra.mxu0 0.0
    %897 = vmatprep.subr.mxu0 0.0
    %898 = vmatpush1.msra.mxu0 0.0
    %899 = vmatprep.subr.mxu0 0.0
    %900 = vmatpush1.msra.mxu0 0.0
    %901 = vmatprep.subr.mxu0 0.0
    %902 = vmatpush1.msra.mxu0 0.0
    %903 = vmatprep.subr.mxu0 0.0
    %904 = vmatpush1.msra.mxu0 0.0
    %905 = vmatprep.subr.mxu0 0.0
    %906 = vmatpush1.msra.mxu0 0.0
    %907 = vmatprep.subr.mxu0 0.0
    %908 = vmatpush1.msra.mxu0 0.0
    %909 = vmatprep.mubr.f32.mxu0 0.0
    %v910 = vand.u32 %v29, 4294901760
    %v911 = vsub.f32 %v29, %v910
    %v912 = vand.u32 %v911, 4294901760
    %913 = vmatmul.mubr.f32.gmra.mrb[0].mxu0 %v912
    %v914 = vpop.f32.mrb[0].mxu0
    %v915 = vadd.f32 %v831, %v914
    %v916 = vpop.f32.mrb[0].mxu0
    %917 = vmatprep.mubr.f32.mxu0 0.0
    %v918 = vand.u32 %v32, 4294901760
    %v919 = vsub.f32 %v32, %v918
    %v920 = vand.u32 %v919, 4294901760
    %921 = vmatmul.mubr.f32.gmra.mrb[0].mxu0 %v920
    %v922 = vpop.f32.mrb[0].mxu0
    %v923 = vadd.f32 %v838, %v922
    %v924 = vpop.f32.mrb[0].mxu0
    %925 = vdwg.mxu0
    %926 = vmatprep.subr.mxu0 0.0
    %v927 = vand.u32 %v564, 4294901760
    %v928 = vsub.f32 %v564, %v927
    %v929 = vand.u32 %v928, 4294901760
    %930 = vmatpush1.msra.mxu0 %v929
    %931 = vmatprep.subr.mxu0 0.0
    %v932 = vand.u32 %v565, 4294901760
    %v933 = vsub.f32 %v565, %v932
    %v934 = vand.u32 %v933, 4294901760
    %935 = vmatpush1.msra.mxu0 %v934
    %936 = vmatprep.subr.mxu0 0.0
    %v937 = vand.u32 %v566, 4294901760
    %v938 = vsub.f32 %v566, %v937
    %v939 = vand.u32 %v938, 4294901760
    %940 = vmatpush1.msra.mxu0 %v939
    %941 = vmatprep.subr.mxu0 0.0
    %v942 = vand.u32 %v567, 4294901760
    %v943 = vsub.f32 %v567, %v942
    %v944 = vand.u32 %v943, 4294901760
    %945 = vmatpush1.msra.mxu0 %v944
    %946 = vmatprep.subr.mxu0 0.0
    %947 = vmatpush1.msra.mxu0 0.0
    %948 = vmatprep.subr.mxu0 0.0
    %949 = vmatpush1.msra.mxu0 0.0
    %950 = vmatprep.subr.mxu0 0.0
    %951 = vmatpush1.msra.mxu0 0.0
    %952 = vmatprep.subr.mxu0 0.0
    %953 = vmatpush1.msra.mxu0 0.0
    %954 = vmatprep.subr.mxu0 0.0
    %955 = vmatpush1.msra.mxu0 0.0
    %956 = vmatprep.subr.mxu0 0.0
    %957 = vmatpush1.msra.mxu0 0.0
    %958 = vmatprep.subr.mxu0 0.0
    %959 = vmatpush1.msra.mxu0 0.0
    %960 = vmatprep.subr.mxu0 0.0
    %961 = vmatpush1.msra.mxu0 0.0
    %962 = vmatprep.subr.mxu0 0.0
    %963 = vmatpush1.msra.mxu0 0.0
    %964 = vmatprep.subr.mxu0 0.0
    %965 = vmatpush1.msra.mxu0 0.0
    %966 = vmatprep.subr.mxu0 0.0
    %967 = vmatpush1.msra.mxu0 0.0
    %968 = vmatprep.subr.mxu0 0.0
    %969 = vmatpush1.msra.mxu0 0.0
    %970 = vmatprep.subr.mxu0 0.0
    %971 = vmatpush1.msra.mxu0 0.0
    %972 = vmatprep.subr.mxu0 0.0
    %973 = vmatpush1.msra.mxu0 0.0
    %974 = vmatprep.subr.mxu0 0.0
    %975 = vmatpush1.msra.mxu0 0.0
    %976 = vmatprep.subr.mxu0 0.0
    %977 = vmatpush1.msra.mxu0 0.0
    %978 = vmatprep.subr.mxu0 0.0
    %979 = vmatpush1.msra.mxu0 0.0
    %980 = vmatprep.subr.mxu0 0.0
    %981 = vmatpush1.msra.mxu0 0.0
    %982 = vmatprep.subr.mxu0 0.0
    %983 = vmatpush1.msra.mxu0 0.0
    %984 = vmatprep.subr.mxu0 0.0
    %985 = vmatpush1.msra.mxu0 0.0
    %986 = vmatprep.subr.mxu0 0.0
    %987 = vmatpush1.msra.mxu0 0.0
    %988 = vmatprep.subr.mxu0 0.0
    %989 = vmatpush1.msra.mxu0 0.0
    %990 = vmatprep.subr.mxu0 0.0
    %991 = vmatpush1.msra.mxu0 0.0
    %992 = vmatprep.subr.mxu0 0.0
    %993 = vmatpush1.msra.mxu0 0.0
    %994 = vmatprep.subr.mxu0 0.0
    %995 = vmatpush1.msra.mxu0 0.0
    %996 = vmatprep.subr.mxu0 0.0
    %997 = vmatpush1.msra.mxu0 0.0
    %998 = vmatprep.subr.mxu0 0.0
    %999 = vmatpush1.msra.mxu0 0.0
    %1000 = vmatprep.subr.mxu0 0.0
    %1001 = vmatpush1.msra.mxu0 0.0
    %1002 = vmatprep.mubr.f32.mxu0 0.0
    %v1003 = vand.u32 %v29, 4294901760
    %1004 = vmatmul.mubr.f32.gmra.mrb[0].mxu0 %v1003
    %v1005 = vpop.f32.mrb[0].mxu0
    %v1006 = vadd.f32 %v915, %v1005
    %v1007 = vpop.f32.mrb[0].mxu0
    %1008 = vmatprep.mubr.f32.mxu0 0.0
    %v1009 = vand.u32 %v32, 4294901760
    %1010 = vmatmul.mubr.f32.gmra.mrb[0].mxu0 %v1009
    %v1011 = vpop.f32.mrb[0].mxu0
    %v1012 = vadd.f32 %v923, %v1011
    %v1013 = vpop.f32.mrb[0].mxu0
    %1014 = vdwg.mxu0
    %1015 = vmatprep.subr.mxu0 0.0
    %v1016 = vand.u32 %v564, 4294901760
    %1017 = vmatpush1.msra.mxu0 %v1016
    %1018 = vmatprep.subr.mxu0 0.0
    %v1019 = vand.u32 %v565, 4294901760
    %1020 = vmatpush1.msra.mxu0 %v1019
    %1021 = vmatprep.subr.mxu0 0.0
    %v1022 = vand.u32 %v566, 4294901760
    %1023 = vmatpush1.msra.mxu0 %v1022
    %1024 = vmatprep.subr.mxu0 0.0
    %v1025 = vand.u32 %v567, 4294901760
    %1026 = vmatpush1.msra.mxu0 %v1025
    %1027 = vmatprep.subr.mxu0 0.0
    %1028 = vmatpush1.msra.mxu0 0.0
    %1029 = vmatprep.subr.mxu0 0.0
    %1030 = vmatpush1.msra.mxu0 0.0
    %1031 = vmatprep.subr.mxu0 0.0
    %1032 = vmatpush1.msra.mxu0 0.0
    %1033 = vmatprep.subr.mxu0 0.0
    %1034 = vmatpush1.msra.mxu0 0.0
    %1035 = vmatprep.subr.mxu0 0.0
    %1036 = vmatpush1.msra.mxu0 0.0
    %1037 = vmatprep.subr.mxu0 0.0
    %1038 = vmatpush1.msra.mxu0 0.0
    %1039 = vmatprep.subr.mxu0 0.0
    %1040 = vmatpush1.msra.mxu0 0.0
    %1041 = vmatprep.subr.mxu0 0.0
    %1042 = vmatpush1.msra.mxu0 0.0
    %1043 = vmatprep.subr.mxu0 0.0
    %1044 = vmatpush1.msra.mxu0 0.0
    %1045 = vmatprep.subr.mxu0 0.0
    %1046 = vmatpush1.msra.mxu0 0.0
    %1047 = vmatprep.subr.mxu0 0.0
    %1048 = vmatpush1.msra.mxu0 0.0
    %1049 = vmatprep.subr.mxu0 0.0
    %1050 = vmatpush1.msra.mxu0 0.0
    %1051 = vmatprep.subr.mxu0 0.0
    %1052 = vmatpush1.msra.mxu0 0.0
    %1053 = vmatprep.subr.mxu0 0.0
    %1054 = vmatpush1.msra.mxu0 0.0
    %1055 = vmatprep.subr.mxu0 0.0
    %1056 = vmatpush1.msra.mxu0 0.0
    %1057 = vmatprep.subr.mxu0 0.0
    %1058 = vmatpush1.msra.mxu0 0.0
    %1059 = vmatprep.subr.mxu0 0.0
    %1060 = vmatpush1.msra.mxu0 0.0
    %1061 = vmatprep.subr.mxu0 0.0
    %1062 = vmatpush1.msra.mxu0 0.0
    %1063 = vmatprep.subr.mxu0 0.0
    %1064 = vmatpush1.msra.mxu0 0.0
    %1065 = vmatprep.subr.mxu0 0.0
    %1066 = vmatpush1.msra.mxu0 0.0
    %1067 = vmatprep.subr.mxu0 0.0
    %1068 = vmatpush1.msra.mxu0 0.0
    %1069 = vmatprep.subr.mxu0 0.0
    %1070 = vmatpush1.msra.mxu0 0.0
    %1071 = vmatprep.subr.mxu0 0.0
    %1072 = vmatpush1.msra.mxu0 0.0
    %1073 = vmatprep.subr.mxu0 0.0
    %1074 = vmatpush1.msra.mxu0 0.0
    %1075 = vmatprep.subr.mxu0 0.0
    %1076 = vmatpush1.msra.mxu0 0.0
    %1077 = vmatprep.subr.mxu0 0.0
    %1078 = vmatpush1.msra.mxu0 0.0
    %1079 = vmatprep.subr.mxu0 0.0
    %1080 = vmatpush1.msra.mxu0 0.0
    %1081 = vmatprep.subr.mxu0 0.0
    %1082 = vmatpush1.msra.mxu0 0.0
    %1083 = vmatprep.mubr.f32.mxu0 0.0
    %v1084 = vand.u32 %v29, 4294901760
    %1085 = vmatmul.mubr.f32.gmra.mrb[0].mxu0 %v1084
    %v1086 = vpop.f32.mrb[0].mxu0
    %v1087 = vadd.f32 %v1006, %v1086
    %v1088 = vpop.f32.mrb[0].mxu0
    %1089 = vmatprep.mubr.f32.mxu0 0.0
    %v1090 = vand.u32 %v32, 4294901760
    %1091 = vmatmul.mubr.f32.gmra.mrb[0].mxu0 %v1090
    %v1092 = vpop.f32.mrb[0].mxu0
    %v1093 = vadd.f32 %v1012, %v1092
    %v1094 = vpop.f32.mrb[0].mxu0
    %1095 = vdwg.mxu0
    %v1096 = vld [vmem:[%s1] sm:$0xff]
    %v1097 = vld [vmem:[%s1 + $0x8] sm:$0xff]
    %vm1098 = vcmask 130048
    %v1100 = vsel %vm1098, %v562, 0
    %v1103 = vsel %vm1098, %v1096, 0
    %1105 = vmatprep.subr.mxu0 0.0
    %v1106 = vand.u32 %v1103, 4294901760
    %1107 = vmatpush1.xpose.msra.mxu0 %v1106
    %1108 = vmatprep.subr.mxu0 0.0
    %1109 = vmatpush1.xpose.msra.mxu0 0.0
    %1110 = vmatprep.subr.mxu0 0.0
    %1111 = vmatpush1.xpose.msra.mxu0 0.0
    %1112 = vmatprep.subr.mxu0 0.0
    %1113 = vmatpush1.xpose.msra.mxu0 0.0
    %1114 = vmatprep.subr.mxu0 0.0
    %1115 = vmatpush1.xpose.msra.mxu0 0.0
    %1116 = vmatprep.subr.mxu0 0.0
    %1117 = vmatpush1.xpose.msra.mxu0 0.0
    %1118 = vmatprep.subr.mxu0 0.0
    %1119 = vmatpush1.xpose.msra.mxu0 0.0
    %1120 = vmatprep.subr.mxu0 0.0
    %1121 = vmatpush1.xpose.msra.mxu0 0.0
    %1122 = vmatprep.subr.mxu0 0.0
    %1123 = vmatpush1.xpose.msra.mxu0 0.0
    %1124 = vmatprep.subr.mxu0 0.0
    %1125 = vmatpush1.xpose.msra.mxu0 0.0
    %1126 = vmatprep.subr.mxu0 0.0
    %1127 = vmatpush1.xpose.msra.mxu0 0.0
    %1128 = vmatprep.subr.mxu0 0.0
    %1129 = vmatpush1.xpose.msra.mxu0 0.0
    %1130 = vmatprep.subr.mxu0 0.0
    %1131 = vmatpush1.xpose.msra.mxu0 0.0
    %1132 = vmatprep.subr.mxu0 0.0
    %1133 = vmatpush1.xpose.msra.mxu0 0.0
    %1134 = vmatprep.subr.mxu0 0.0
    %1135 = vmatpush1.xpose.msra.mxu0 0.0
    %1136 = vmatprep.subr.mxu0 0.0
    %1137 = vmatpush1.xpose.msra.mxu0 0.0
    %1138 = vmatprep.subr.mxu0 0.0
    %1139 = vmatpush1.xpose.msra.mxu0 0.0
    %1140 = vmatprep.subr.mxu0 0.0
    %1141 = vmatpush1.xpose.msra.mxu0 0.0
    %1142 = vmatprep.subr.mxu0 0.0
    %1143 = vmatpush1.xpose.msra.mxu0 0.0
    %1144 = vmatprep.subr.mxu0 0.0
    %1145 = vmatpush1.xpose.msra.mxu0 0.0
    %1146 = vmatprep.subr.mxu0 0.0
    %1147 = vmatpush1.xpose.msra.mxu0 0.0
    %1148 = vmatprep.subr.mxu0 0.0
    %1149 = vmatpush1.xpose.msra.mxu0 0.0
    %1150 = vmatprep.subr.mxu0 0.0
    %1151 = vmatpush1.xpose.msra.mxu0 0.0
    %1152 = vmatprep.subr.mxu0 0.0
    %1153 = vmatpush1.xpose.msra.mxu0 0.0
    %1154 = vmatprep.subr.mxu0 0.0
    %1155 = vmatpush1.xpose.msra.mxu0 0.0
    %1156 = vmatprep.subr.mxu0 0.0
    %1157 = vmatpush1.xpose.msra.mxu0 0.0
    %1158 = vmatprep.subr.mxu0 0.0
    %1159 = vmatpush1.xpose.msra.mxu0 0.0
    %1160 = vmatprep.subr.mxu0 0.0
    %1161 = vmatpush1.xpose.msra.mxu0 0.0
    %1162 = vmatprep.subr.mxu0 0.0
    %1163 = vmatpush1.xpose.msra.mxu0 0.0
    %1164 = vmatprep.subr.mxu0 0.0
    %1165 = vmatpush1.xpose.msra.mxu0 0.0
    %1166 = vmatprep.subr.mxu0 0.0
    %1167 = vmatpush1.xpose.msra.mxu0 0.0
    %1168 = vmatprep.subr.mxu0 0.0
    %1169 = vmatpush1.xpose.msra.mxu0 0.0
    %1170 = vmatprep.mubr.f32.mxu0 0.0
    %v1171 = vand.u32 %v1100, 4294901760
    %v1172 = vsub.f32 %v1100, %v1171
    %v1173 = vand.u32 %v1172, 4294901760
    %v1174 = vsub.f32 %v1172, %v1173
    %v1175 = vand.u32 %v1174, 4294901760
    %1176 = vmatmul.mubr.f32.gmra.mrb[0].mxu0 %v1175
    %v1177 = vpop.f32.mrb[0].mxu0
    %v1178 = vadd.f32 0.0, %v1177
    %v1179 = vpop.f32.mrb[0].mxu0
    %1180 = vdwg.mxu0
    %1181 = vmatprep.subr.mxu0 0.0
    %v1182 = vand.u32 %v1103, 4294901760
    %v1183 = vsub.f32 %v1103, %v1182
    %v1184 = vand.u32 %v1183, 4294901760
    %v1185 = vsub.f32 %v1183, %v1184
    %v1186 = vand.u32 %v1185, 4294901760
    %1187 = vmatpush1.xpose.msra.mxu0 %v1186
    %1188 = vmatprep.subr.mxu0 0.0
    %1189 = vmatpush1.xpose.msra.mxu0 0.0
    %1190 = vmatprep.subr.mxu0 0.0
    %1191 = vmatpush1.xpose.msra.mxu0 0.0
    %1192 = vmatprep.subr.mxu0 0.0
    %1193 = vmatpush1.xpose.msra.mxu0 0.0
    %1194 = vmatprep.subr.mxu0 0.0
    %1195 = vmatpush1.xpose.msra.mxu0 0.0
    %1196 = vmatprep.subr.mxu0 0.0
    %1197 = vmatpush1.xpose.msra.mxu0 0.0
    %1198 = vmatprep.subr.mxu0 0.0
    %1199 = vmatpush1.xpose.msra.mxu0 0.0
    %1200 = vmatprep.subr.mxu0 0.0
    %1201 = vmatpush1.xpose.msra.mxu0 0.0
    %1202 = vmatprep.subr.mxu0 0.0
    %1203 = vmatpush1.xpose.msra.mxu0 0.0
    %1204 = vmatprep.subr.mxu0 0.0
    %1205 = vmatpush1.xpose.msra.mxu0 0.0
    %1206 = vmatprep.subr.mxu0 0.0
    %1207 = vmatpush1.xpose.msra.mxu0 0.0
    %1208 = vmatprep.subr.mxu0 0.0
    %1209 = vmatpush1.xpose.msra.mxu0 0.0
    %1210 = vmatprep.subr.mxu0 0.0
    %1211 = vmatpush1.xpose.msra.mxu0 0.0
    %1212 = vmatprep.subr.mxu0 0.0
    %1213 = vmatpush1.xpose.msra.mxu0 0.0
    %1214 = vmatprep.subr.mxu0 0.0
    %1215 = vmatpush1.xpose.msra.mxu0 0.0
    %1216 = vmatprep.subr.mxu0 0.0
    %1217 = vmatpush1.xpose.msra.mxu0 0.0
    %1218 = vmatprep.subr.mxu0 0.0
    %1219 = vmatpush1.xpose.msra.mxu0 0.0
    %1220 = vmatprep.subr.mxu0 0.0
    %1221 = vmatpush1.xpose.msra.mxu0 0.0
    %1222 = vmatprep.subr.mxu0 0.0
    %1223 = vmatpush1.xpose.msra.mxu0 0.0
    %1224 = vmatprep.subr.mxu0 0.0
    %1225 = vmatpush1.xpose.msra.mxu0 0.0
    %1226 = vmatprep.subr.mxu0 0.0
    %1227 = vmatpush1.xpose.msra.mxu0 0.0
    %1228 = vmatprep.subr.mxu0 0.0
    %1229 = vmatpush1.xpose.msra.mxu0 0.0
    %1230 = vmatprep.subr.mxu0 0.0
    %1231 = vmatpush1.xpose.msra.mxu0 0.0
    %1232 = vmatprep.subr.mxu0 0.0
    %1233 = vmatpush1.xpose.msra.mxu0 0.0
    %1234 = vmatprep.subr.mxu0 0.0
    %1235 = vmatpush1.xpose.msra.mxu0 0.0
    %1236 = vmatprep.subr.mxu0 0.0
    %1237 = vmatpush1.xpose.msra.mxu0 0.0
    %1238 = vmatprep.subr.mxu0 0.0
    %1239 = vmatpush1.xpose.msra.mxu0 0.0
    %1240 = vmatprep.subr.mxu0 0.0
    %1241 = vmatpush1.xpose.msra.mxu0 0.0
    %1242 = vmatprep.subr.mxu0 0.0
    %1243 = vmatpush1.xpose.msra.mxu0 0.0
    %1244 = vmatprep.subr.mxu0 0.0
    %1245 = vmatpush1.xpose.msra.mxu0 0.0
    %1246 = vmatprep.subr.mxu0 0.0
    %1247 = vmatpush1.xpose.msra.mxu0 0.0
    %1248 = vmatprep.subr.mxu0 0.0
    %1249 = vmatpush1.xpose.msra.mxu0 0.0
    %1250 = vmatprep.mubr.f32.mxu0 0.0
    %v1251 = vand.u32 %v1100, 4294901760
    %1252 = vmatmul.mubr.f32.gmra.mrb[0].mxu0 %v1251
    %v1253 = vpop.f32.mrb[0].mxu0
    %v1254 = vadd.f32 %v1178, %v1253
    %v1255 = vpop.f32.mrb[0].mxu0
    %1256 = vdwg.mxu0
    %1257 = vmatprep.subr.mxu0 0.0
    %v1258 = vand.u32 %v1103, 4294901760
    %v1259 = vsub.f32 %v1103, %v1258
    %1260 = vmatpush1.xpose.msra.mxu0 %v1259
    %1261 = vmatprep.subr.mxu0 0.0
    %1262 = vmatpush1.xpose.msra.mxu0 0.0
    %1263 = vmatprep.subr.mxu0 0.0
    %1264 = vmatpush1.xpose.msra.mxu0 0.0
    %1265 = vmatprep.subr.mxu0 0.0
    %1266 = vmatpush1.xpose.msra.mxu0 0.0
    %1267 = vmatprep.subr.mxu0 0.0
    %1268 = vmatpush1.xpose.msra.mxu0 0.0
    %1269 = vmatprep.subr.mxu0 0.0
    %1270 = vmatpush1.xpose.msra.mxu0 0.0
    %1271 = vmatprep.subr.mxu0 0.0
    %1272 = vmatpush1.xpose.msra.mxu0 0.0
    %1273 = vmatprep.subr.mxu0 0.0
    %1274 = vmatpush1.xpose.msra.mxu0 0.0
    %1275 = vmatprep.subr.mxu0 0.0
    %1276 = vmatpush1.xpose.msra.mxu0 0.0
    %1277 = vmatprep.subr.mxu0 0.0
    %1278 = vmatpush1.xpose.msra.mxu0 0.0
    %1279 = vmatprep.subr.mxu0 0.0
    %1280 = vmatpush1.xpose.msra.mxu0 0.0
    %1281 = vmatprep.subr.mxu0 0.0
    %1282 = vmatpush1.xpose.msra.mxu0 0.0
    %1283 = vmatprep.subr.mxu0 0.0
    %1284 = vmatpush1.xpose.msra.mxu0 0.0
    %1285 = vmatprep.subr.mxu0 0.0
    %1286 = vmatpush1.xpose.msra.mxu0 0.0
    %1287 = vmatprep.subr.mxu0 0.0
    %1288 = vmatpush1.xpose.msra.mxu0 0.0
    %1289 = vmatprep.subr.mxu0 0.0
    %1290 = vmatpush1.xpose.msra.mxu0 0.0
    %1291 = vmatprep.subr.mxu0 0.0
    %1292 = vmatpush1.xpose.msra.mxu0 0.0
    %1293 = vmatprep.subr.mxu0 0.0
    %1294 = vmatpush1.xpose.msra.mxu0 0.0
    %1295 = vmatprep.subr.mxu0 0.0
    %1296 = vmatpush1.xpose.msra.mxu0 0.0
    %1297 = vmatprep.subr.mxu0 0.0
    %1298 = vmatpush1.xpose.msra.mxu0 0.0
    %1299 = vmatprep.subr.mxu0 0.0
    %1300 = vmatpush1.xpose.msra.mxu0 0.0
    %1301 = vmatprep.subr.mxu0 0.0
    %1302 = vmatpush1.xpose.msra.mxu0 0.0
    %1303 = vmatprep.subr.mxu0 0.0
    %1304 = vmatpush1.xpose.msra.mxu0 0.0
    %1305 = vmatprep.subr.mxu0 0.0
    %1306 = vmatpush1.xpose.msra.mxu0 0.0
    %1307 = vmatprep.subr.mxu0 0.0
    %1308 = vmatpush1.xpose.msra.mxu0 0.0
    %1309 = vmatprep.subr.mxu0 0.0
    %1310 = vmatpush1.xpose.msra.mxu0 0.0
    %1311 = vmatprep.subr.mxu0 0.0
    %1312 = vmatpush1.xpose.msra.mxu0 0.0
    %1313 = vmatprep.subr.mxu0 0.0
    %1314 = vmatpush1.xpose.msra.mxu0 0.0
    %1315 = vmatprep.subr.mxu0 0.0
    %1316 = vmatpush1.xpose.msra.mxu0 0.0
    %1317 = vmatprep.subr.mxu0 0.0
    %1318 = vmatpush1.xpose.msra.mxu0 0.0
    %1319 = vmatprep.subr.mxu0 0.0
    %1320 = vmatpush1.xpose.msra.mxu0 0.0
    %1321 = vmatprep.subr.mxu0 0.0
    %1322 = vmatpush1.xpose.msra.mxu0 0.0
    %1323 = vmatprep.mubr.f32.mxu0 0.0
    %v1324 = vand.u32 %v1100, 4294901760
    %v1325 = vsub.f32 %v1100, %v1324
    %1326 = vmatmul.mubr.f32.gmra.mrb[0].mxu0 %v1325
    %v1327 = vpop.f32.mrb[0].mxu0
    %v1328 = vadd.f32 %v1254, %v1327
    %v1329 = vpop.f32.mrb[0].mxu0
    %1330 = vdwg.mxu0
    %1331 = vmatprep.subr.mxu0 0.0
    %v1332 = vand.u32 %v1103, 4294901760
    %1333 = vmatpush1.xpose.msra.mxu0 %v1332
    %1334 = vmatprep.subr.mxu0 0.0
    %1335 = vmatpush1.xpose.msra.mxu0 0.0
    %1336 = vmatprep.subr.mxu0 0.0
    %1337 = vmatpush1.xpose.msra.mxu0 0.0
    %1338 = vmatprep.subr.mxu0 0.0
    %1339 = vmatpush1.xpose.msra.mxu0 0.0
    %1340 = vmatprep.subr.mxu0 0.0
    %1341 = vmatpush1.xpose.msra.mxu0 0.0
    %1342 = vmatprep.subr.mxu0 0.0
    %1343 = vmatpush1.xpose.msra.mxu0 0.0
    %1344 = vmatprep.subr.mxu0 0.0
    %1345 = vmatpush1.xpose.msra.mxu0 0.0
    %1346 = vmatprep.subr.mxu0 0.0
    %1347 = vmatpush1.xpose.msra.mxu0 0.0
    %1348 = vmatprep.subr.mxu0 0.0
    %1349 = vmatpush1.xpose.msra.mxu0 0.0
    %1350 = vmatprep.subr.mxu0 0.0
    %1351 = vmatpush1.xpose.msra.mxu0 0.0
    %1352 = vmatprep.subr.mxu0 0.0
    %1353 = vmatpush1.xpose.msra.mxu0 0.0
    %1354 = vmatprep.subr.mxu0 0.0
    %1355 = vmatpush1.xpose.msra.mxu0 0.0
    %1356 = vmatprep.subr.mxu0 0.0
    %1357 = vmatpush1.xpose.msra.mxu0 0.0
    %1358 = vmatprep.subr.mxu0 0.0
    %1359 = vmatpush1.xpose.msra.mxu0 0.0
    %1360 = vmatprep.subr.mxu0 0.0
    %1361 = vmatpush1.xpose.msra.mxu0 0.0
    %1362 = vmatprep.subr.mxu0 0.0
    %1363 = vmatpush1.xpose.msra.mxu0 0.0
    %1364 = vmatprep.subr.mxu0 0.0
    %1365 = vmatpush1.xpose.msra.mxu0 0.0
    %1366 = vmatprep.subr.mxu0 0.0
    %1367 = vmatpush1.xpose.msra.mxu0 0.0
    %1368 = vmatprep.subr.mxu0 0.0
    %1369 = vmatpush1.xpose.msra.mxu0 0.0
    %1370 = vmatprep.subr.mxu0 0.0
    %1371 = vmatpush1.xpose.msra.mxu0 0.0
    %1372 = vmatprep.subr.mxu0 0.0
    %1373 = vmatpush1.xpose.msra.mxu0 0.0
    %1374 = vmatprep.subr.mxu0 0.0
    %1375 = vmatpush1.xpose.msra.mxu0 0.0
    %1376 = vmatprep.subr.mxu0 0.0
    %1377 = vmatpush1.xpose.msra.mxu0 0.0
    %1378 = vmatprep.subr.mxu0 0.0
    %1379 = vmatpush1.xpose.msra.mxu0 0.0
    %1380 = vmatprep.subr.mxu0 0.0
    %1381 = vmatpush1.xpose.msra.mxu0 0.0
    %1382 = vmatprep.subr.mxu0 0.0
    %1383 = vmatpush1.xpose.msra.mxu0 0.0
    %1384 = vmatprep.subr.mxu0 0.0
    %1385 = vmatpush1.xpose.msra.mxu0 0.0
    %1386 = vmatprep.subr.mxu0 0.0
    %1387 = vmatpush1.xpose.msra.mxu0 0.0
    %1388 = vmatprep.subr.mxu0 0.0
    %1389 = vmatpush1.xpose.msra.mxu0 0.0
    %1390 = vmatprep.subr.mxu0 0.0
    %1391 = vmatpush1.xpose.msra.mxu0 0.0
    %1392 = vmatprep.subr.mxu0 0.0
    %1393 = vmatpush1.xpose.msra.mxu0 0.0
    %1394 = vmatprep.subr.mxu0 0.0
    %1395 = vmatpush1.xpose.msra.mxu0 0.0
    %1396 = vmatprep.mubr.f32.mxu0 0.0
    %v1397 = vand.u32 %v1100, 4294901760
    %v1398 = vsub.f32 %v1100, %v1397
    %v1399 = vand.u32 %v1398, 4294901760
    %1400 = vmatmul.mubr.f32.gmra.mrb[0].mxu0 %v1399
    %v1401 = vpop.f32.mrb[0].mxu0
    %v1402 = vadd.f32 %v1328, %v1401
    %v1403 = vpop.f32.mrb[0].mxu0
    %1404 = vdwg.mxu0
    %1405 = vmatprep.subr.mxu0 0.0
    %v1406 = vand.u32 %v1103, 4294901760
    %v1407 = vsub.f32 %v1103, %v1406
    %v1408 = vand.u32 %v1407, 4294901760
    %1409 = vmatpush1.xpose.msra.mxu0 %v1408
    %1410 = vmatprep.subr.mxu0 0.0
    %1411 = vmatpush1.xpose.msra.mxu0 0.0
    %1412 = vmatprep.subr.mxu0 0.0
    %1413 = vmatpush1.xpose.msra.mxu0 0.0
    %1414 = vmatprep.subr.mxu0 0.0
    %1415 = vmatpush1.xpose.msra.mxu0 0.0
    %1416 = vmatprep.subr.mxu0 0.0
    %1417 = vmatpush1.xpose.msra.mxu0 0.0
    %1418 = vmatprep.subr.mxu0 0.0
    %1419 = vmatpush1.xpose.msra.mxu0 0.0
    %1420 = vmatprep.subr.mxu0 0.0
    %1421 = vmatpush1.xpose.msra.mxu0 0.0
    %1422 = vmatprep.subr.mxu0 0.0
    %1423 = vmatpush1.xpose.msra.mxu0 0.0
    %1424 = vmatprep.subr.mxu0 0.0
    %1425 = vmatpush1.xpose.msra.mxu0 0.0
    %1426 = vmatprep.subr.mxu0 0.0
    %1427 = vmatpush1.xpose.msra.mxu0 0.0
    %1428 = vmatprep.subr.mxu0 0.0
    %1429 = vmatpush1.xpose.msra.mxu0 0.0
    %1430 = vmatprep.subr.mxu0 0.0
    %1431 = vmatpush1.xpose.msra.mxu0 0.0
    %1432 = vmatprep.subr.mxu0 0.0
    %1433 = vmatpush1.xpose.msra.mxu0 0.0
    %1434 = vmatprep.subr.mxu0 0.0
    %1435 = vmatpush1.xpose.msra.mxu0 0.0
    %1436 = vmatprep.subr.mxu0 0.0
    %1437 = vmatpush1.xpose.msra.mxu0 0.0
    %1438 = vmatprep.subr.mxu0 0.0
    %1439 = vmatpush1.xpose.msra.mxu0 0.0
    %1440 = vmatprep.subr.mxu0 0.0
    %1441 = vmatpush1.xpose.msra.mxu0 0.0
    %1442 = vmatprep.subr.mxu0 0.0
    %1443 = vmatpush1.xpose.msra.mxu0 0.0
    %1444 = vmatprep.subr.mxu0 0.0
    %1445 = vmatpush1.xpose.msra.mxu0 0.0
    %1446 = vmatprep.subr.mxu0 0.0
    %1447 = vmatpush1.xpose.msra.mxu0 0.0
    %1448 = vmatprep.subr.mxu0 0.0
    %1449 = vmatpush1.xpose.msra.mxu0 0.0
    %1450 = vmatprep.subr.mxu0 0.0
    %1451 = vmatpush1.xpose.msra.mxu0 0.0
    %1452 = vmatprep.subr.mxu0 0.0
    %1453 = vmatpush1.xpose.msra.mxu0 0.0
    %1454 = vmatprep.subr.mxu0 0.0
    %1455 = vmatpush1.xpose.msra.mxu0 0.0
    %1456 = vmatprep.subr.mxu0 0.0
    %1457 = vmatpush1.xpose.msra.mxu0 0.0
    %1458 = vmatprep.subr.mxu0 0.0
    %1459 = vmatpush1.xpose.msra.mxu0 0.0
    %1460 = vmatprep.subr.mxu0 0.0
    %1461 = vmatpush1.xpose.msra.mxu0 0.0
    %1462 = vmatprep.subr.mxu0 0.0
    %1463 = vmatpush1.xpose.msra.mxu0 0.0
    %1464 = vmatprep.subr.mxu0 0.0
    %1465 = vmatpush1.xpose.msra.mxu0 0.0
    %1466 = vmatprep.subr.mxu0 0.0
    %1467 = vmatpush1.xpose.msra.mxu0 0.0
    %1468 = vmatprep.subr.mxu0 0.0
    %1469 = vmatpush1.xpose.msra.mxu0 0.0
    %1470 = vmatprep.subr.mxu0 0.0
    %1471 = vmatpush1.xpose.msra.mxu0 0.0
    %1472 = vmatprep.mubr.f32.mxu0 0.0
    %v1473 = vand.u32 %v1100, 4294901760
    %1474 = vmatmul.mubr.f32.gmra.mrb[0].mxu0 %v1473
    %v1475 = vpop.f32.mrb[0].mxu0
    %v1476 = vadd.f32 %v1402, %v1475
    %v1477 = vpop.f32.mrb[0].mxu0
    %1478 = vdwg.mxu0
    %1479 = vmatprep.subr.mxu0 0.0
    %v1480 = vand.u32 %v1103, 4294901760
    %1481 = vmatpush1.xpose.msra.mxu0 %v1480
    %1482 = vmatprep.subr.mxu0 0.0
    %1483 = vmatpush1.xpose.msra.mxu0 0.0
    %1484 = vmatprep.subr.mxu0 0.0
    %1485 = vmatpush1.xpose.msra.mxu0 0.0
    %1486 = vmatprep.subr.mxu0 0.0
    %1487 = vmatpush1.xpose.msra.mxu0 0.0
    %1488 = vmatprep.subr.mxu0 0.0
    %1489 = vmatpush1.xpose.msra.mxu0 0.0
    %1490 = vmatprep.subr.mxu0 0.0
    %1491 = vmatpush1.xpose.msra.mxu0 0.0
    %1492 = vmatprep.subr.mxu0 0.0
    %1493 = vmatpush1.xpose.msra.mxu0 0.0
    %1494 = vmatprep.subr.mxu0 0.0
    %1495 = vmatpush1.xpose.msra.mxu0 0.0
    %1496 = vmatprep.subr.mxu0 0.0
    %1497 = vmatpush1.xpose.msra.mxu0 0.0
    %1498 = vmatprep.subr.mxu0 0.0
    %1499 = vmatpush1.xpose.msra.mxu0 0.0
    %1500 = vmatprep.subr.mxu0 0.0
    %1501 = vmatpush1.xpose.msra.mxu0 0.0
    %1502 = vmatprep.subr.mxu0 0.0
    %1503 = vmatpush1.xpose.msra.mxu0 0.0
    %1504 = vmatprep.subr.mxu0 0.0
    %1505 = vmatpush1.xpose.msra.mxu0 0.0
    %1506 = vmatprep.subr.mxu0 0.0
    %1507 = vmatpush1.xpose.msra.mxu0 0.0
    %1508 = vmatprep.subr.mxu0 0.0
    %1509 = vmatpush1.xpose.msra.mxu0 0.0
    %1510 = vmatprep.subr.mxu0 0.0
    %1511 = vmatpush1.xpose.msra.mxu0 0.0
    %1512 = vmatprep.subr.mxu0 0.0
    %1513 = vmatpush1.xpose.msra.mxu0 0.0
    %1514 = vmatprep.subr.mxu0 0.0
    %1515 = vmatpush1.xpose.msra.mxu0 0.0
    %1516 = vmatprep.subr.mxu0 0.0
    %1517 = vmatpush1.xpose.msra.mxu0 0.0
    %1518 = vmatprep.subr.mxu0 0.0
    %1519 = vmatpush1.xpose.msra.mxu0 0.0
    %1520 = vmatprep.subr.mxu0 0.0
    %1521 = vmatpush1.xpose.msra.mxu0 0.0
    %1522 = vmatprep.subr.mxu0 0.0
    %1523 = vmatpush1.xpose.msra.mxu0 0.0
    %1524 = vmatprep.subr.mxu0 0.0
    %1525 = vmatpush1.xpose.msra.mxu0 0.0
    %1526 = vmatprep.subr.mxu0 0.0
    %1527 = vmatpush1.xpose.msra.mxu0 0.0
    %1528 = vmatprep.subr.mxu0 0.0
    %1529 = vmatpush1.xpose.msra.mxu0 0.0
    %1530 = vmatprep.subr.mxu0 0.0
    %1531 = vmatpush1.xpose.msra.mxu0 0.0
    %1532 = vmatprep.subr.mxu0 0.0
    %1533 = vmatpush1.xpose.msra.mxu0 0.0
    %1534 = vmatprep.subr.mxu0 0.0
    %1535 = vmatpush1.xpose.msra.mxu0 0.0
    %1536 = vmatprep.subr.mxu0 0.0
    %1537 = vmatpush1.xpose.msra.mxu0 0.0
    %1538 = vmatprep.subr.mxu0 0.0
    %1539 = vmatpush1.xpose.msra.mxu0 0.0
    %1540 = vmatprep.subr.mxu0 0.0
    %1541 = vmatpush1.xpose.msra.mxu0 0.0
    %1542 = vmatprep.subr.mxu0 0.0
    %1543 = vmatpush1.xpose.msra.mxu0 0.0
    %1544 = vmatprep.mubr.f32.mxu0 0.0
    %v1545 = vand.u32 %v1100, 4294901760
    %1546 = vmatmul.mubr.f32.gmra.mrb[0].mxu0 %v1545
    %v1547 = vpop.f32.mrb[0].mxu0
    %v1548 = vadd.f32 %v1476, %v1547
    %v1549 = vpop.f32.mrb[0].mxu0
    %1550 = vdwg.mxu0
    %v1552 = vsel %vm1098, %v563, 0
    %v1555 = vsel %vm1098, %v1097, 0
    %1557 = vmatprep.subr.mxu0 0.0
    %v1558 = vand.u32 %v1555, 4294901760
    %1559 = vmatpush1.xpose.msra.mxu0 %v1558
    %1560 = vmatprep.subr.mxu0 0.0
    %1561 = vmatpush1.xpose.msra.mxu0 0.0
    %1562 = vmatprep.subr.mxu0 0.0
    %1563 = vmatpush1.xpose.msra.mxu0 0.0
    %1564 = vmatprep.subr.mxu0 0.0
    %1565 = vmatpush1.xpose.msra.mxu0 0.0
    %1566 = vmatprep.subr.mxu0 0.0
    %1567 = vmatpush1.xpose.msra.mxu0 0.0
    %1568 = vmatprep.subr.mxu0 0.0
    %1569 = vmatpush1.xpose.msra.mxu0 0.0
    %1570 = vmatprep.subr.mxu0 0.0
    %1571 = vmatpush1.xpose.msra.mxu0 0.0
    %1572 = vmatprep.subr.mxu0 0.0
    %1573 = vmatpush1.xpose.msra.mxu0 0.0
    %1574 = vmatprep.subr.mxu0 0.0
    %1575 = vmatpush1.xpose.msra.mxu0 0.0
    %1576 = vmatprep.subr.mxu0 0.0
    %1577 = vmatpush1.xpose.msra.mxu0 0.0
    %1578 = vmatprep.subr.mxu0 0.0
    %1579 = vmatpush1.xpose.msra.mxu0 0.0
    %1580 = vmatprep.subr.mxu0 0.0
    %1581 = vmatpush1.xpose.msra.mxu0 0.0
    %1582 = vmatprep.subr.mxu0 0.0
    %1583 = vmatpush1.xpose.msra.mxu0 0.0
    %1584 = vmatprep.subr.mxu0 0.0
    %1585 = vmatpush1.xpose.msra.mxu0 0.0
    %1586 = vmatprep.subr.mxu0 0.0
    %1587 = vmatpush1.xpose.msra.mxu0 0.0
    %1588 = vmatprep.subr.mxu0 0.0
    %1589 = vmatpush1.xpose.msra.mxu0 0.0
    %1590 = vmatprep.subr.mxu0 0.0
    %1591 = vmatpush1.xpose.msra.mxu0 0.0
    %1592 = vmatprep.subr.mxu0 0.0
    %1593 = vmatpush1.xpose.msra.mxu0 0.0
    %1594 = vmatprep.subr.mxu0 0.0
    %1595 = vmatpush1.xpose.msra.mxu0 0.0
    %1596 = vmatprep.subr.mxu0 0.0
    %1597 = vmatpush1.xpose.msra.mxu0 0.0
    %1598 = vmatprep.subr.mxu0 0.0
    %1599 = vmatpush1.xpose.msra.mxu0 0.0
    %1600 = vmatprep.subr.mxu0 0.0
    %1601 = vmatpush1.xpose.msra.mxu0 0.0
    %1602 = vmatprep.subr.mxu0 0.0
    %1603 = vmatpush1.xpose.msra.mxu0 0.0
    %1604 = vmatprep.subr.mxu0 0.0
    %1605 = vmatpush1.xpose.msra.mxu0 0.0
    %1606 = vmatprep.subr.mxu0 0.0
    %1607 = vmatpush1.xpose.msra.mxu0 0.0
    %1608 = vmatprep.subr.mxu0 0.0
    %1609 = vmatpush1.xpose.msra.mxu0 0.0
    %1610 = vmatprep.subr.mxu0 0.0
    %1611 = vmatpush1.xpose.msra.mxu0 0.0
    %1612 = vmatprep.subr.mxu0 0.0
    %1613 = vmatpush1.xpose.msra.mxu0 0.0
    %1614 = vmatprep.subr.mxu0 0.0
    %1615 = vmatpush1.xpose.msra.mxu0 0.0
    %1616 = vmatprep.subr.mxu0 0.0
    %1617 = vmatpush1.xpose.msra.mxu0 0.0
    %1618 = vmatprep.subr.mxu0 0.0
    %1619 = vmatpush1.xpose.msra.mxu0 0.0
    %1620 = vmatprep.subr.mxu0 0.0
    %1621 = vmatpush1.xpose.msra.mxu0 0.0
    %1622 = vmatprep.mubr.f32.mxu0 0.0
    %v1623 = vand.u32 %v1552, 4294901760
    %v1624 = vsub.f32 %v1552, %v1623
    %v1625 = vand.u32 %v1624, 4294901760
    %v1626 = vsub.f32 %v1624, %v1625
    %v1627 = vand.u32 %v1626, 4294901760
    %1628 = vmatmul.mubr.f32.gmra.mrb[0].mxu0 %v1627
    %v1629 = vpop.f32.mrb[0].mxu0
    %v1630 = vadd.f32 0.0, %v1629
    %v1631 = vpop.f32.mrb[0].mxu0
    %1632 = vdwg.mxu0
    %1633 = vmatprep.subr.mxu0 0.0
    %v1634 = vand.u32 %v1555, 4294901760
    %v1635 = vsub.f32 %v1555, %v1634
    %v1636 = vand.u32 %v1635, 4294901760
    %v1637 = vsub.f32 %v1635, %v1636
    %v1638 = vand.u32 %v1637, 4294901760
    %1639 = vmatpush1.xpose.msra.mxu0 %v1638
    %1640 = vmatprep.subr.mxu0 0.0
    %1641 = vmatpush1.xpose.msra.mxu0 0.0
    %1642 = vmatprep.subr.mxu0 0.0
    %1643 = vmatpush1.xpose.msra.mxu0 0.0
    %1644 = vmatprep.subr.mxu0 0.0
    %1645 = vmatpush1.xpose.msra.mxu0 0.0
    %1646 = vmatprep.subr.mxu0 0.0
    %1647 = vmatpush1.xpose.msra.mxu0 0.0
    %1648 = vmatprep.subr.mxu0 0.0
    %1649 = vmatpush1.xpose.msra.mxu0 0.0
    %1650 = vmatprep.subr.mxu0 0.0
    %1651 = vmatpush1.xpose.msra.mxu0 0.0
    %1652 = vmatprep.subr.mxu0 0.0
    %1653 = vmatpush1.xpose.msra.mxu0 0.0
    %1654 = vmatprep.subr.mxu0 0.0
    %1655 = vmatpush1.xpose.msra.mxu0 0.0
    %1656 = vmatprep.subr.mxu0 0.0
    %1657 = vmatpush1.xpose.msra.mxu0 0.0
    %1658 = vmatprep.subr.mxu0 0.0
    %1659 = vmatpush1.xpose.msra.mxu0 0.0
    %1660 = vmatprep.subr.mxu0 0.0
    %1661 = vmatpush1.xpose.msra.mxu0 0.0
    %1662 = vmatprep.subr.mxu0 0.0
    %1663 = vmatpush1.xpose.msra.mxu0 0.0
    %1664 = vmatprep.subr.mxu0 0.0
    %1665 = vmatpush1.xpose.msra.mxu0 0.0
    %1666 = vmatprep.subr.mxu0 0.0
    %1667 = vmatpush1.xpose.msra.mxu0 0.0
    %1668 = vmatprep.subr.mxu0 0.0
    %1669 = vmatpush1.xpose.msra.mxu0 0.0
    %1670 = vmatprep.subr.mxu0 0.0
    %1671 = vmatpush1.xpose.msra.mxu0 0.0
    %1672 = vmatprep.subr.mxu0 0.0
    %1673 = vmatpush1.xpose.msra.mxu0 0.0
    %1674 = vmatprep.subr.mxu0 0.0
    %1675 = vmatpush1.xpose.msra.mxu0 0.0
    %1676 = vmatprep.subr.mxu0 0.0
    %1677 = vmatpush1.xpose.msra.mxu0 0.0
    %1678 = vmatprep.subr.mxu0 0.0
    %1679 = vmatpush1.xpose.msra.mxu0 0.0
    %1680 = vmatprep.subr.mxu0 0.0
    %1681 = vmatpush1.xpose.msra.mxu0 0.0
    %1682 = vmatprep.subr.mxu0 0.0
    %1683 = vmatpush1.xpose.msra.mxu0 0.0
    %1684 = vmatprep.subr.mxu0 0.0
    %1685 = vmatpush1.xpose.msra.mxu0 0.0
    %1686 = vmatprep.subr.mxu0 0.0
    %1687 = vmatpush1.xpose.msra.mxu0 0.0
    %1688 = vmatprep.subr.mxu0 0.0
    %1689 = vmatpush1.xpose.msra.mxu0 0.0
    %1690 = vmatprep.subr.mxu0 0.0
    %1691 = vmatpush1.xpose.msra.mxu0 0.0
    %1692 = vmatprep.subr.mxu0 0.0
    %1693 = vmatpush1.xpose.msra.mxu0 0.0
    %1694 = vmatprep.subr.mxu0 0.0
    %1695 = vmatpush1.xpose.msra.mxu0 0.0
    %1696 = vmatprep.subr.mxu0 0.0
    %1697 = vmatpush1.xpose.msra.mxu0 0.0
    %1698 = vmatprep.subr.mxu0 0.0
    %1699 = vmatpush1.xpose.msra.mxu0 0.0
    %1700 = vmatprep.subr.mxu0 0.0
    %1701 = vmatpush1.xpose.msra.mxu0 0.0
    %1702 = vmatprep.mubr.f32.mxu0 0.0
    %v1703 = vand.u32 %v1552, 4294901760
    %1704 = vmatmul.mubr.f32.gmra.mrb[0].mxu0 %v1703
    %v1705 = vpop.f32.mrb[0].mxu0
    %v1706 = vadd.f32 %v1630, %v1705
    %v1707 = vpop.f32.mrb[0].mxu0
    %1708 = vdwg.mxu0
    %1709 = vmatprep.subr.mxu0 0.0
    %v1710 = vand.u32 %v1555, 4294901760
    %v1711 = vsub.f32 %v1555, %v1710
    %1712 = vmatpush1.xpose.msra.mxu0 %v1711
    %1713 = vmatprep.subr.mxu0 0.0
    %1714 = vmatpush1.xpose.msra.mxu0 0.0
    %1715 = vmatprep.subr.mxu0 0.0
    %1716 = vmatpush1.xpose.msra.mxu0 0.0
    %1717 = vmatprep.subr.mxu0 0.0
    %1718 = vmatpush1.xpose.msra.mxu0 0.0
    %1719 = vmatprep.subr.mxu0 0.0
    %1720 = vmatpush1.xpose.msra.mxu0 0.0
    %1721 = vmatprep.subr.mxu0 0.0
    %1722 = vmatpush1.xpose.msra.mxu0 0.0
    %1723 = vmatprep.subr.mxu0 0.0
    %1724 = vmatpush1.xpose.msra.mxu0 0.0
    %1725 = vmatprep.subr.mxu0 0.0
    %1726 = vmatpush1.xpose.msra.mxu0 0.0
    %1727 = vmatprep.subr.mxu0 0.0
    %1728 = vmatpush1.xpose.msra.mxu0 0.0
    %1729 = vmatprep.subr.mxu0 0.0
    %1730 = vmatpush1.xpose.msra.mxu0 0.0
    %1731 = vmatprep.subr.mxu0 0.0
    %1732 = vmatpush1.xpose.msra.mxu0 0.0
    %1733 = vmatprep.subr.mxu0 0.0
    %1734 = vmatpush1.xpose.msra.mxu0 0.0
    %1735 = vmatprep.subr.mxu0 0.0
    %1736 = vmatpush1.xpose.msra.mxu0 0.0
    %1737 = vmatprep.subr.mxu0 0.0
    %1738 = vmatpush1.xpose.msra.mxu0 0.0
    %1739 = vmatprep.subr.mxu0 0.0
    %1740 = vmatpush1.xpose.msra.mxu0 0.0
    %1741 = vmatprep.subr.mxu0 0.0
    %1742 = vmatpush1.xpose.msra.mxu0 0.0
    %1743 = vmatprep.subr.mxu0 0.0
    %1744 = vmatpush1.xpose.msra.mxu0 0.0
    %1745 = vmatprep.subr.mxu0 0.0
    %1746 = vmatpush1.xpose.msra.mxu0 0.0
    %1747 = vmatprep.subr.mxu0 0.0
    %1748 = vmatpush1.xpose.msra.mxu0 0.0
    %1749 = vmatprep.subr.mxu0 0.0
    %1750 = vmatpush1.xpose.msra.mxu0 0.0
    %1751 = vmatprep.subr.mxu0 0.0
    %1752 = vmatpush1.xpose.msra.mxu0 0.0
    %1753 = vmatprep.subr.mxu0 0.0
    %1754 = vmatpush1.xpose.msra.mxu0 0.0
    %1755 = vmatprep.subr.mxu0 0.0
    %1756 = vmatpush1.xpose.msra.mxu0 0.0
    %1757 = vmatprep.subr.mxu0 0.0
    %1758 = vmatpush1.xpose.msra.mxu0 0.0
    %1759 = vmatprep.subr.mxu0 0.0
    %1760 = vmatpush1.xpose.msra.mxu0 0.0
    %1761 = vmatprep.subr.mxu0 0.0
    %1762 = vmatpush1.xpose.msra.mxu0 0.0
    %1763 = vmatprep.subr.mxu0 0.0
    %1764 = vmatpush1.xpose.msra.mxu0 0.0
    %1765 = vmatprep.subr.mxu0 0.0
    %1766 = vmatpush1.xpose.msra.mxu0 0.0
    %1767 = vmatprep.subr.mxu0 0.0
    %1768 = vmatpush1.xpose.msra.mxu0 0.0
    %1769 = vmatprep.subr.mxu0 0.0
    %1770 = vmatpush1.xpose.msra.mxu0 0.0
    %1771 = vmatprep.subr.mxu0 0.0
    %1772 = vmatpush1.xpose.msra.mxu0 0.0
    %1773 = vmatprep.subr.mxu0 0.0
    %1774 = vmatpush1.xpose.msra.mxu0 0.0
    %1775 = vmatprep.mubr.f32.mxu0 0.0
    %v1776 = vand.u32 %v1552, 4294901760
    %v1777 = vsub.f32 %v1552, %v1776
    %1778 = vmatmul.mubr.f32.gmra.mrb[0].mxu0 %v1777
    %v1779 = vpop.f32.mrb[0].mxu0
    %v1780 = vadd.f32 %v1706, %v1779
    %v1781 = vpop.f32.mrb[0].mxu0
    %1782 = vdwg.mxu0
    %1783 = vmatprep.subr.mxu0 0.0
    %v1784 = vand.u32 %v1555, 4294901760
    %1785 = vmatpush1.xpose.msra.mxu0 %v1784
    %1786 = vmatprep.subr.mxu0 0.0
    %1787 = vmatpush1.xpose.msra.mxu0 0.0
    %1788 = vmatprep.subr.mxu0 0.0
    %1789 = vmatpush1.xpose.msra.mxu0 0.0
    %1790 = vmatprep.subr.mxu0 0.0
    %1791 = vmatpush1.xpose.msra.mxu0 0.0
    %1792 = vmatprep.subr.mxu0 0.0
    %1793 = vmatpush1.xpose.msra.mxu0 0.0
    %1794 = vmatprep.subr.mxu0 0.0
    %1795 = vmatpush1.xpose.msra.mxu0 0.0
    %1796 = vmatprep.subr.mxu0 0.0
    %1797 = vmatpush1.xpose.msra.mxu0 0.0
    %1798 = vmatprep.subr.mxu0 0.0
    %1799 = vmatpush1.xpose.msra.mxu0 0.0
    %1800 = vmatprep.subr.mxu0 0.0
    %1801 = vmatpush1.xpose.msra.mxu0 0.0
    %1802 = vmatprep.subr.mxu0 0.0
    %1803 = vmatpush1.xpose.msra.mxu0 0.0
    %1804 = vmatprep.subr.mxu0 0.0
    %1805 = vmatpush1.xpose.msra.mxu0 0.0
    %1806 = vmatprep.subr.mxu0 0.0
    %1807 = vmatpush1.xpose.msra.mxu0 0.0
    %1808 = vmatprep.subr.mxu0 0.0
    %1809 = vmatpush1.xpose.msra.mxu0 0.0
    %1810 = vmatprep.subr.mxu0 0.0
    %1811 = vmatpush1.xpose.msra.mxu0 0.0
    %1812 = vmatprep.subr.mxu0 0.0
    %1813 = vmatpush1.xpose.msra.mxu0 0.0
    %1814 = vmatprep.subr.mxu0 0.0
    %1815 = vmatpush1.xpose.msra.mxu0 0.0
    %1816 = vmatprep.subr.mxu0 0.0
    %1817 = vmatpush1.xpose.msra.mxu0 0.0
    %1818 = vmatprep.subr.mxu0 0.0
    %1819 = vmatpush1.xpose.msra.mxu0 0.0
    %1820 = vmatprep.subr.mxu0 0.0
    %1821 = vmatpush1.xpose.msra.mxu0 0.0
    %1822 = vmatprep.subr.mxu0 0.0
    %1823 = vmatpush1.xpose.msra.mxu0 0.0
    %1824 = vmatprep.subr.mxu0 0.0
    %1825 = vmatpush1.xpose.msra.mxu0 0.0
    %1826 = vmatprep.subr.mxu0 0.0
    %1827 = vmatpush1.xpose.msra.mxu0 0.0
    %1828 = vmatprep.subr.mxu0 0.0
    %1829 = vmatpush1.xpose.msra.mxu0 0.0
    %1830 = vmatprep.subr.mxu0 0.0
    %1831 = vmatpush1.xpose.msra.mxu0 0.0
    %1832 = vmatprep.subr.mxu0 0.0
    %1833 = vmatpush1.xpose.msra.mxu0 0.0
    %1834 = vmatprep.subr.mxu0 0.0
    %1835 = vmatpush1.xpose.msra.mxu0 0.0
    %1836 = vmatprep.subr.mxu0 0.0
    %1837 = vmatpush1.xpose.msra.mxu0 0.0
    %1838 = vmatprep.subr.mxu0 0.0
    %1839 = vmatpush1.xpose.msra.mxu0 0.0
    %1840 = vmatprep.subr.mxu0 0.0
    %1841 = vmatpush1.xpose.msra.mxu0 0.0
    %1842 = vmatprep.subr.mxu0 0.0
    %1843 = vmatpush1.xpose.msra.mxu0 0.0
    %1844 = vmatprep.subr.mxu0 0.0
    %1845 = vmatpush1.xpose.msra.mxu0 0.0
    %1846 = vmatprep.subr.mxu0 0.0
    %1847 = vmatpush1.xpose.msra.mxu0 0.0
    %1848 = vmatprep.mubr.f32.mxu0 0.0
    %v1849 = vand.u32 %v1552, 4294901760
    %v1850 = vsub.f32 %v1552, %v1849
    %v1851 = vand.u32 %v1850, 4294901760
    %1852 = vmatmul.mubr.f32.gmra.mrb[0].mxu0 %v1851
    %v1853 = vpop.f32.mrb[0].mxu0
    %v1854 = vadd.f32 %v1780, %v1853
    %v1855 = vpop.f32.mrb[0].mxu0
    %1856 = vdwg.mxu0
    %1857 = vmatprep.subr.mxu0 0.0
    %v1858 = vand.u32 %v1555, 4294901760
    %v1859 = vsub.f32 %v1555, %v1858
    %v1860 = vand.u32 %v1859, 4294901760
    %1861 = vmatpush1.xpose.msra.mxu0 %v1860
    %1862 = vmatprep.subr.mxu0 0.0
    %1863 = vmatpush1.xpose.msra.mxu0 0.0
    %1864 = vmatprep.subr.mxu0 0.0
    %1865 = vmatpush1.xpose.msra.mxu0 0.0
    %1866 = vmatprep.subr.mxu0 0.0
    %1867 = vmatpush1.xpose.msra.mxu0 0.0
    %1868 = vmatprep.subr.mxu0 0.0
    %1869 = vmatpush1.xpose.msra.mxu0 0.0
    %1870 = vmatprep.subr.mxu0 0.0
    %1871 = vmatpush1.xpose.msra.mxu0 0.0
    %1872 = vmatprep.subr.mxu0 0.0
    %1873 = vmatpush1.xpose.msra.mxu0 0.0
    %1874 = vmatprep.subr.mxu0 0.0
    %1875 = vmatpush1.xpose.msra.mxu0 0.0
    %1876 = vmatprep.subr.mxu0 0.0
    %1877 = vmatpush1.xpose.msra.mxu0 0.0
    %1878 = vmatprep.subr.mxu0 0.0
    %1879 = vmatpush1.xpose.msra.mxu0 0.0
    %1880 = vmatprep.subr.mxu0 0.0
    %1881 = vmatpush1.xpose.msra.mxu0 0.0
    %1882 = vmatprep.subr.mxu0 0.0
    %1883 = vmatpush1.xpose.msra.mxu0 0.0
    %1884 = vmatprep.subr.mxu0 0.0
    %1885 = vmatpush1.xpose.msra.mxu0 0.0
    %1886 = vmatprep.subr.mxu0 0.0
    %1887 = vmatpush1.xpose.msra.mxu0 0.0
    %1888 = vmatprep.subr.mxu0 0.0
    %1889 = vmatpush1.xpose.msra.mxu0 0.0
    %1890 = vmatprep.subr.mxu0 0.0
    %1891 = vmatpush1.xpose.msra.mxu0 0.0
    %1892 = vmatprep.subr.mxu0 0.0
    %1893 = vmatpush1.xpose.msra.mxu0 0.0
    %1894 = vmatprep.subr.mxu0 0.0
    %1895 = vmatpush1.xpose.msra.mxu0 0.0
    %1896 = vmatprep.subr.mxu0 0.0
    %1897 = vmatpush1.xpose.msra.mxu0 0.0
    %1898 = vmatprep.subr.mxu0 0.0
    %1899 = vmatpush1.xpose.msra.mxu0 0.0
    %1900 = vmatprep.subr.mxu0 0.0
    %1901 = vmatpush1.xpose.msra.mxu0 0.0
    %1902 = vmatprep.subr.mxu0 0.0
    %1903 = vmatpush1.xpose.msra.mxu0 0.0
    %1904 = vmatprep.subr.mxu0 0.0
    %1905 = vmatpush1.xpose.msra.mxu0 0.0
    %1906 = vmatprep.subr.mxu0 0.0
    %1907 = vmatpush1.xpose.msra.mxu0 0.0
    %1908 = vmatprep.subr.mxu0 0.0
    %1909 = vmatpush1.xpose.msra.mxu0 0.0
    %1910 = vmatprep.subr.mxu0 0.0
    %1911 = vmatpush1.xpose.msra.mxu0 0.0
    %1912 = vmatprep.subr.mxu0 0.0
    %1913 = vmatpush1.xpose.msra.mxu0 0.0
    %1914 = vmatprep.subr.mxu0 0.0
    %1915 = vmatpush1.xpose.msra.mxu0 0.0
    %1916 = vmatprep.subr.mxu0 0.0
    %1917 = vmatpush1.xpose.msra.mxu0 0.0
    %1918 = vmatprep.subr.mxu0 0.0
    %1919 = vmatpush1.xpose.msra.mxu0 0.0
    %1920 = vmatprep.subr.mxu0 0.0
    %1921 = vmatpush1.xpose.msra.mxu0 0.0
    %1922 = vmatprep.subr.mxu0 0.0
    %1923 = vmatpush1.xpose.msra.mxu0 0.0
    %1924 = vmatprep.mubr.f32.mxu0 0.0
    %v1925 = vand.u32 %v1552, 4294901760
    %1926 = vmatmul.mubr.f32.gmra.mrb[0].mxu0 %v1925
    %v1927 = vpop.f32.mrb[0].mxu0
    %v1928 = vadd.f32 %v1854, %v1927
    %v1929 = vpop.f32.mrb[0].mxu0
    %1930 = vdwg.mxu0
    %1931 = vmatprep.subr.mxu0 0.0
    %v1932 = vand.u32 %v1555, 4294901760
    %1933 = vmatpush1.xpose.msra.mxu0 %v1932
    %1934 = vmatprep.subr.mxu0 0.0
    %1935 = vmatpush1.xpose.msra.mxu0 0.0
    %1936 = vmatprep.subr.mxu0 0.0
    %1937 = vmatpush1.xpose.msra.mxu0 0.0
    %1938 = vmatprep.subr.mxu0 0.0
    %1939 = vmatpush1.xpose.msra.mxu0 0.0
    %1940 = vmatprep.subr.mxu0 0.0
    %1941 = vmatpush1.xpose.msra.mxu0 0.0
    %1942 = vmatprep.subr.mxu0 0.0
    %1943 = vmatpush1.xpose.msra.mxu0 0.0
    %1944 = vmatprep.subr.mxu0 0.0
    %1945 = vmatpush1.xpose.msra.mxu0 0.0
    %1946 = vmatprep.subr.mxu0 0.0
    %1947 = vmatpush1.xpose.msra.mxu0 0.0
    %1948 = vmatprep.subr.mxu0 0.0
    %1949 = vmatpush1.xpose.msra.mxu0 0.0
    %1950 = vmatprep.subr.mxu0 0.0
    %1951 = vmatpush1.xpose.msra.mxu0 0.0
    %1952 = vmatprep.subr.mxu0 0.0
    %1953 = vmatpush1.xpose.msra.mxu0 0.0
    %1954 = vmatprep.subr.mxu0 0.0
    %1955 = vmatpush1.xpose.msra.mxu0 0.0
    %1956 = vmatprep.subr.mxu0 0.0
    %1957 = vmatpush1.xpose.msra.mxu0 0.0
    %1958 = vmatprep.subr.mxu0 0.0
    %1959 = vmatpush1.xpose.msra.mxu0 0.0
    %1960 = vmatprep.subr.mxu0 0.0
    %1961 = vmatpush1.xpose.msra.mxu0 0.0
    %1962 = vmatprep.subr.mxu0 0.0
    %1963 = vmatpush1.xpose.msra.mxu0 0.0
    %1964 = vmatprep.subr.mxu0 0.0
    %1965 = vmatpush1.xpose.msra.mxu0 0.0
    %1966 = vmatprep.subr.mxu0 0.0
    %1967 = vmatpush1.xpose.msra.mxu0 0.0
    %1968 = vmatprep.subr.mxu0 0.0
    %1969 = vmatpush1.xpose.msra.mxu0 0.0
    %1970 = vmatprep.subr.mxu0 0.0
    %1971 = vmatpush1.xpose.msra.mxu0 0.0
    %1972 = vmatprep.subr.mxu0 0.0
    %1973 = vmatpush1.xpose.msra.mxu0 0.0
    %1974 = vmatprep.subr.mxu0 0.0
    %1975 = vmatpush1.xpose.msra.mxu0 0.0
    %1976 = vmatprep.subr.mxu0 0.0
    %1977 = vmatpush1.xpose.msra.mxu0 0.0
    %1978 = vmatprep.subr.mxu0 0.0
    %1979 = vmatpush1.xpose.msra.mxu0 0.0
    %1980 = vmatprep.subr.mxu0 0.0
    %1981 = vmatpush1.xpose.msra.mxu0 0.0
    %1982 = vmatprep.subr.mxu0 0.0
    %1983 = vmatpush1.xpose.msra.mxu0 0.0
    %1984 = vmatprep.subr.mxu0 0.0
    %1985 = vmatpush1.xpose.msra.mxu0 0.0
    %1986 = vmatprep.subr.mxu0 0.0
    %1987 = vmatpush1.xpose.msra.mxu0 0.0
    %1988 = vmatprep.subr.mxu0 0.0
    %1989 = vmatpush1.xpose.msra.mxu0 0.0
    %1990 = vmatprep.subr.mxu0 0.0
    %1991 = vmatpush1.xpose.msra.mxu0 0.0
    %1992 = vmatprep.subr.mxu0 0.0
    %1993 = vmatpush1.xpose.msra.mxu0 0.0
    %1994 = vmatprep.subr.mxu0 0.0
    %1995 = vmatpush1.xpose.msra.mxu0 0.0
    %1996 = vmatprep.mubr.f32.mxu0 0.0
    %v1997 = vand.u32 %v1552, 4294901760
    %1998 = vmatmul.mubr.f32.gmra.mrb[0].mxu0 %v1997
    %v1999 = vpop.f32.mrb[0].mxu0
    %v2000 = vadd.f32 %v1928, %v1999
    %v2001 = vpop.f32.mrb[0].mxu0
    %2002 = vdwg.mxu0
    %vm2003 = vcmask 64512
    %v2004 = vsel %vm2003, %v1548, -inf
    %2005 = vmax.xlane.f32.xlu0 %v2004
    %v2006 = vpop.xlane.xlu0 %2005
    %v2007 = vsel %vm2003, %v2000, -inf
    %2008 = vmax.xlane.f32.xlu0 %v2007
    %v2009 = vpop.xlane.xlu0 %2008
    %v2010 = vsub.f32 %v1548, %v2006
    %v2011 = vsub.f32 %v2000, %v2009
    %v2012 = vmul.f32 %v2010, 1.442695
    %v2013 = vpow.pop %v2012
    %v2014 = vmul.f32 %v2011, 1.442695
    %v2015 = vpow.pop %v2014
    %v2016 = vsel %vm2003, %v2013, 0.0
    %2017 = vadd.xlane.f32.xlu0 %v2016
    %v2018 = vpop.xlane.xlu0 %2017
    %v2019 = vsel %vm2003, %v2015, 0.0
    %2020 = vadd.xlane.f32.xlu0 %v2019
    %v2021 = vpop.xlane.xlu0 %2020
    %v2022 = vrcp.pop %v2018
    %v2023 = vmul.f32 %v2013, %v2022
    %v2024 = vrcp.pop %v2021
    %v2025 = vmul.f32 %v2015, %v2024
    %s2026 = smul.u32 0, 8
    %v2027 = vlaneseq
    %v2028 = vshrl.u32 %v2027, 7
    %v2029 = vstv %s2026
    %v2030 = vadd.s32 %v2029, %v2028
    %v2031 = vlaneseq
    %v2032 = vand.u32 %v2031, 127
    %vm2033 = vcmp.gt.s32.totalorder %v2032, %v2030
    %v2034 = vmul.f32 %v2023, 0.25
    %v2035 = vmul.f32 %v2025, 0.25
    %v2036 = vmul.f32 %v2034, 1.442695
    %v2037 = vpow.pop %v2036
    %v2038 = vmul.f32 %v2035, 1.442695
    %v2039 = vpow.pop %v2038
    %v2040 = vsel %vm2033, 1, 0
    %vm2041 = vcmp.eq.s32.totalorder %v2040, 1
    %v2042 = vsel %vm2041, 0.0, %v2037
    %v2043 = vsel %vm2041, 0.0, %v2039
    %v2044 = vsel %vm2003, %v2042, 0.0
    %2045 = vadd.xlane.f32.xlu0 %v2044
    %v2046 = vpop.xlane.xlu0 %2045
    %v2047 = vsel %vm2003, %v2043, 0.0
    %2048 = vadd.xlane.f32.xlu0 %v2047
    %v2049 = vpop.xlane.xlu0 %2048
    %v2050 = vrcp.pop %v2046
    %v2051 = vmul.f32 %v2042, %v2050
    %v2052 = vrcp.pop %v2049
    %v2053 = vmul.f32 %v2043, %v2052
    %2054 = vst.msk [vmem:[#allocation2] sm:$0xff] %vm2003, %v2051
    %2055 = vst.msk [vmem:[#allocation2 + $0x8] sm:$0xff] %vm2003, %v2053
    %2056 = vst.msk [vmem:[#allocation4] sm:$0xff] %vm1098, %v1087
    %2057 = vst.msk [vmem:[#allocation4 + $0x8] sm:$0xff] %vm1098, %v1093
    // Predicated region
    $region18: #{tpu_custom_call.1} parent=1 // pred_check
      _
    $region19: #{tpu_custom_call.1} parent=1 // pred_check_branch
      %2059 = sbr.rel (0) target = $region21
    $region20: #{tpu_custom_call.1} parent=1 // pred_region
      %s2061 = ssub.s32 256, 256
      %2062 = vsyncadd [#allocation3], %s2061
      %s2063 = sshll.u32 [#allocation2], 4
      %s2064 = int_to_ptr.vmem [resolvable:$true] %s2063
      %2069 = dma.vmem_to_hbm [thread:$0]  %s2064, 256, %s4, [#allocation3], 128, 128, 8
    $region21: #{tpu_custom_call.1} parent=1 // pred_fallthru
      _
    // Predicated region
    $region22: #{tpu_custom_call.1} parent=1 // pred_check
      _
    $region23: #{tpu_custom_call.1} parent=1 // pred_check_branch
      %2071 = sbr.rel (0) target = $region25
    $region24: #{tpu_custom_call.1} parent=1 // pred_region
      %s2073 = ssub.s32 256, 256
      %2074 = vsyncadd [#allocation5], %s2073
      %s2075 = sshll.u32 [#allocation4], 4
      %s2076 = int_to_ptr.vmem [resolvable:$true] %s2075
      %2081 = dma.vmem_to_hbm [thread:$0]  %s2076, 256, %s5, [#allocation5], 128, 128, 8
    $region25: #{tpu_custom_call.1} parent=1 // pred_fallthru
      _
    // Predicated region
    $region26: #{tpu_custom_call.1} parent=1 // pred_check
      _
    $region27: #{tpu_custom_call.1} parent=1 // pred_check_branch
      %2083 = sbr.rel (0) target = $region29
    $region28: #{tpu_custom_call.1} parent=1 // pred_region
      %2084 = dma.done [#allocation3], 256
    $region29: #{tpu_custom_call.1} parent=1 // pred_fallthru
      _
    // Predicated region
    $region30: #{tpu_custom_call.1} parent=1 // pred_check
      _
    $region31: #{tpu_custom_call.1} parent=1 // pred_check_branch
      %2086 = sbr.rel (0) target = $region33
    $region32: #{tpu_custom_call.1} parent=1 // pred_region
      %2087 = dma.done [#allocation5], 256
    $region33: #{tpu_custom_call.1} parent=1 // pred_fallthru
      _
    %2088 = vsyncpa [#allocation3], 1
    %2089 = vsyncpa [#allocation5], 1

</llo_original>
